<compile_context>
chip_gen: v5e
topology: v5e:2x2
jax: 0.10.0
libtpu: 0.0.40
codegen_flags: <defaults>
</compile_context>

<pallas_src>
import functools
import math

import jax
import jax.numpy as jnp
from jax.experimental import pallas as pl
from jax.experimental.pallas import tpu as pltpu

IN_C = 80.0          # 16 pose features + 64 depth features
LN_EPS = 1e-5        # torch.nn.LayerNorm default


# ----------------------------------------------------------------------------
# Small helpers shared by the kernel, the backbone and the reference path
# ----------------------------------------------------------------------------
def _silu(x):
    return x * jax.nn.sigmoid(x)


def _ln_cm(x, g, b):
    """LayerNorm over the channel (sublane) axis 0 of a (C, T) block."""
    m = jnp.mean(x, axis=0, keepdims=True)
    c = x - m
    v = jnp.mean(c * c, axis=0, keepdims=True)
    return c * jax.lax.rsqrt(v + LN_EPS) * g + b


# ----------------------------------------------------------------------------
# Pallas kernel: fused per-pixel MLP head, channel-major (C, T) blocks
# ----------------------------------------------------------------------------
def head_kernel(pose_ref, feat_ref, slab_ref,
                w1p_ref, w1d_ref, w2_ref, wsp_ref, wsd_ref,
                out_ref):
    f32 = jnp.float32
    bf = w1p_ref.dtype                      # bf16 matmul-input dtype

    pose = pose_ref[...].astype(f32)        # (3, T)   pixels on lanes
    d_lp = feat_ref[...]                    # (64, T)  bf16 feature stream
    d = d_lp.astype(f32)                    # f32 working copy
    slab = slab_ref[...]                    # (80, 128) f32 constant slab

    # --- unpack constant columns (static slices, once per tile) ---
    wp0 = slab[0:16, 0:1]
    wp1 = slab[0:16, 1:2]
    wp2 = slab[0:16, 2:3]
    bp = slab[0:16, 3:4]
    g1p = slab[0:16, 4:5]
    b1p = slab[0:16, 5:6]
    g1d = slab[0:64, 6:7]
    b1d = slab[0:64, 7:8]
    b1 = slab[0:32, 8:9]
    g2 = slab[0:32, 9:10]
    b2g = slab[0:32, 10:11]
    b2 = slab[0:16, 11:12]
    bs = slab[0:16, 12:13]
    g3 = slab[0:16, 13:14]
    b3g = slab[0:16, 14:15]
    wd = slab[0:16, 15:16]
    bd = slab[0:1, 16:17]

    # ---- pose encoder: Linear(3 -> 16), 3 broadcast FMAs on the VPU ----
    p = (wp0 * pose[0:1, :] + wp1 * pose[1:2, :]
         + wp2 * pose[2:3, :] + bp)                                   # (16, T)

    # ---- res_block_mlp_LN on x = concat([pose_feat(16), depth_feat(64)]) ----
    # TODO(synk): res_block_mlp_LN internals not provided; assumed block:
    #   LN(80) -> SiLU -> Linear(80,32) -> LN(32) -> SiLU -> Linear(32,16)
    #   plus shortcut Linear(80,16) on the raw (pre-LN) concat.
    # LayerNorm over the virtual 80-channel concat via split sublane sums:
    inv_c = 1.0 / IN_C
    mean = (jnp.sum(p, axis=0, keepdims=True)
            + jnp.sum(d, axis=0, keepdims=True)) * inv_c              # (1, T)
    cp = p - mean
    cd = d - mean
    var = (jnp.sum(cp * cp, axis=0, keepdims=True)
           + jnp.sum(cd * cd, axis=0, keepdims=True)) * inv_c
    rstd = jax.lax.rsqrt(var + LN_EPS)                                # (1, T)
    pn = _silu(cp * rstd * g1p + b1p)                                 # (16, T)
    dn = _silu(cd * rstd * g1d + b1d)                                 # (64, T)

    # main branch: Linear(80->32) with split weights (no concat copy needed)
    h = (jnp.dot(w1p_ref[...], pn.astype(bf), preferred_element_type=f32)
         + jnp.dot(w1d_ref[...], dn.astype(bf), preferred_element_type=f32)
         + b1)                                                        # (32, T)
    h = _silu(_ln_cm(h, g2, b2g))
    h = jnp.dot(w2_ref[...], h.astype(bf), preferred_element_type=f32) + b2   # (16, T)

    # shortcut: Linear(80->16) on the raw concat (split weights again)
    sc = (jnp.dot(wsp_ref[...], p.astype(bf), preferred_element_type=f32)
          + jnp.dot(wsd_ref[...], d_lp.astype(bf), preferred_element_type=f32)
          + bs)                                                       # (16, T)
    x = h + sc

    # ---- decoder: LayerNorm(16) -> SiLU -> Linear(16 -> 1) ----
    y = _silu(_ln_cm(x, g3, b3g))                                     # (16, T)
    out = jnp.sum(y * wd, axis=0, keepdims=True) + bd                 # (1, T) lane-dense

    out_ref[...] = out.astype(out_ref.dtype)


# ----------------------------------------------------------------------------
# Wrapper: tiling, param packing, pallas_call
# ----------------------------------------------------------------------------
def _pick_tile(hw, batch):
    """Pixels per tile (lane axis).  Cap at 1024 (tile >1024 only wastes VMEM,
    we are not HBM-bound); prefer >= 8 total grid steps so both v7x cores get
    >= 4 iterations and BlockSpec double-buffering can actually overlap."""
    hw128 = ((hw + 127) // 128) * 128
    for t in (1024, 512, 256, 128):
        if hw128 % t == 0 and (hw128 // t) * batch >= 8:
            return t
    for t in (1024, 512, 256, 128):
        if hw128 % t == 0:
            return t
    return 128


def _pack_param_slab(params):
    """Pack all small per-channel constants as COLUMNS of an (80, 128) slab
    (channel-major: each constant broadcasts as (C, 1) against (C, T))."""
    def col(v):
        v = jnp.asarray(v, jnp.float32).reshape(-1)
        return jnp.pad(v, (0, 80 - v.shape[0]))

    wp = params["wp"]              # (16, 3)
    wd = params["wd"]              # (1, 16)
    g1, b1ln = params["ln1_g"], params["ln1_b"]
    cols = [
        wp[:, 0], wp[:, 1], wp[:, 2], params["bp"],
        g1[:16], b1ln[:16], g1[16:], b1ln[16:],
        params["b1"], params["ln2_g"], params["ln2_b"],
        params["b2"], params["bs"],
        params["ln3_g"], params["ln3_b"],
        wd[0], params["bd"],
    ]
    slab = jnp.stack([col(v) for v in cols], axis=1)        # (80, 17)
    return jnp.pad(slab, ((0, 0), (0, 128 - slab.shape[1])))  # (80, 128)


def head_pallas(pose_cm, feat_cm, params):
    """pose_cm: (B, 3, HW) f32, feat_cm: (B, 64, HW) bf16 -> (B, 1, HW) f32."""
    B, _, HW = pose_cm.shape
    tile = _pick_tile(HW, B)
    HWp = pl.cdiv(HW, tile) * tile
    if HWp != HW:
        pose_cm = jnp.pad(pose_cm, ((0, 0), (0, 0), (0, HWp - HW)))
        feat_cm = jnp.pad(feat_cm, ((0, 0), (0, 0), (0, HWp - HW)))
    n_tiles = HWp // tile

    slab = _pack_param_slab(params)
    bf = jnp.bfloat16
    w1 = params["w1"].astype(bf)                # (32, 80)
    ws = params["ws"].astype(bf)                # (16, 80)
    w2 = params["w2"].astype(bf)                # (16, 32)
    w1p, w1d = w1[:, :16], w1[:, 16:]
    wsp, wsd = ws[:, :16], ws[:, 16:]

    n_px = B * HWp
    weight_bytes = 4 * slab.size + 2 * (w1.size + ws.size + w2.size)
    cost = pl.CostEstimate(
        flops=int(10200 * n_px),
        transcendentals=int(128 * n_px),
        bytes_accessed=int(144 * n_px + weight_bytes),
    )

    out = pl.pallas_call(
        head_kernel,
        out_shape=jax.ShapeDtypeStruct((B, 1, HWp), jnp.float32),
        grid=(B, n_tiles),
        in_specs=[
            pl.BlockSpec((None, 3, tile), lambda b, t: (b, 0, t)),
            pl.BlockSpec((None, 64, tile), lambda b, t: (b, 0, t)),
            pl.BlockSpec(slab.shape, lambda b, t: (0, 0)),
            pl.BlockSpec(w1p.shape, lambda b, t: (0, 0)),
            pl.BlockSpec(w1d.shape, lambda b, t: (0, 0)),
            pl.BlockSpec(w2.shape, lambda b, t: (0, 0)),
            pl.BlockSpec(wsp.shape, lambda b, t: (0, 0)),
            pl.BlockSpec(wsd.shape, lambda b, t: (0, 0)),
        ],
        out_specs=pl.BlockSpec((None, 1, tile), lambda b, t: (b, 0, t)),
        compiler_params=pltpu.CompilerParams(
            dimension_semantics=("parallel", "parallel")),
        cost_estimate=cost,
    )(pose_cm, feat_cm, slab, w1p, w1d, w2, wsp, wsd)

    return out[:, :, :HW]


# ----------------------------------------------------------------------------
# Pure-JAX reference head (f32) for validation
# ----------------------------------------------------------------------------
def head_reference(pose_cm, feat_cm_f32, params):
    def lin(w, b, x):                              # (o,c) @ (B,c,T) + b
        return jnp.einsum("oc,bct->bot", w, x) + b[None, :, None]

    def ln(x, g, b):
        m = jnp.mean(x, axis=1, keepdims=True)
        c = x - m
        v = jnp.mean(c * c, axis=1, keepdims=True)
        return (c * jax.lax.rsqrt(v + LN_EPS) * g[None, :, None]
                + b[None, :, None])

    p = lin(params["wp"], params["bp"], pose_cm)                       # (B,16,T)
    x = jnp.concatenate([p, feat_cm_f32], axis=1)                      # (B,80,T)
    h = _silu(ln(x, params["ln1_g"], params["ln1_b"]))
    h = lin(params["w1"], params["b1"], h)
    h = _silu(ln(h, params["ln2_g"], params["ln2_b"]))
    h = lin(params["w2"], params["b2"], h)
    sc = lin(params["ws"], params["bs"], x)
    z = h + sc
    y = _silu(ln(z, params["ln3_g"], params["ln3_b"]))
    return lin(params["wd"], params["bd"], y)                          # (B,1,T)


# ----------------------------------------------------------------------------
# Plain-JAX glue (standardization, backbone stand-in) — all NCHW, no transposes
# ----------------------------------------------------------------------------
def standardize_depth(depth):
    # TODO(synk): exact `standardize_depth` was not provided; use per-image
    # (mean, std) standardization.
    m = jnp.mean(depth, axis=(1, 2, 3), keepdims=True)
    s = jnp.std(depth, axis=(1, 2, 3), keepdims=True)
    return (depth - m) / (s + 1e-5)


def backbone_nchw(depth, conv_w, conv_b):
    # TODO(synk): `res_unet` architecture is not provided; substitute a single
    # 3x3 conv (1->64) + InstanceNorm2d + SiLU producing the 64-channel feature
    # map the head expects.  Kept NCHW so the channel-major flatten is free.
    y = jax.lax.conv_general_dilated(
        depth, conv_w, window_strides=(1, 1), padding="SAME",
        dimension_numbers=("NCHW", "OIHW", "NCHW"))
    y = y + conv_b[None, :, None, None]
    m = jnp.mean(y, axis=(2, 3), keepdims=True)
    v = jnp.var(y, axis=(2, 3), keepdims=True)
    y = (y - m) * jax.lax.rsqrt(v + 1e-5)
    # bf16 feature map in HBM halves the head kernel's dominant input stream;
    # compute inside the kernel stays f32 (f32 LN stats / f32 accumulation).
    return _silu(y).astype(jnp.bfloat16)


@functools.partial(jax.jit, static_argnames=("use_pallas",))
def suction_quality_forward(depth, pose, params, use_pallas=True):
    B, _, H, W = depth.shape
    HW = H * W
    d = standardize_depth(depth)
    feat = backbone_nchw(d, params["conv_w"], params["conv_b"])   # (B,64,H,W) bf16
    pose_cm = pose.reshape(B, 3, HW)                              # free NCHW flatten
    feat_cm = feat.reshape(B, 64, HW)                             # free NCHW flatten
    if use_pallas:
        out_cm = head_pallas(pose_cm, feat_cm, params)            # (B,1,HW) f32
    else:
        out_cm = head_reference(pose_cm, feat_cm.astype(jnp.float32), params)
    return out_cm.reshape(B, 1, H, W)


# ----------------------------------------------------------------------------
# Deterministic parameter init (PyTorch-style Linear init, (out, in) weights)
# ----------------------------------------------------------------------------
def _linear(key, fan_in, fan_out):
    kw, kb = jax.random.split(key)
    bound = 1.0 / math.sqrt(fan_in)
    w = jax.random.uniform(kw, (fan_out, fan_in), jnp.float32, -bound, bound)
    b = jax.random.uniform(kb, (fan_out,), jnp.float32, -bound, bound)
    return w, b


def init_params(key):
    ks = jax.random.split(key, 8)
    conv_bound = 1.0 / math.sqrt(1 * 3 * 3)
    conv_w = jax.random.uniform(ks[0], (64, 1, 3, 3), jnp.float32,   # OIHW
                                -conv_bound, conv_bound)
    conv_b = jax.random.uniform(ks[1], (64,), jnp.float32, -conv_bound, conv_bound)
    wp, bp = _linear(ks[2], 3, 16)       # pose_transform
    w1, b1 = _linear(ks[3], 80, 32)      # res_block linear 1
    w2, b2 = _linear(ks[4], 32, 16)      # res_block linear 2
    ws, bs = _linear(ks[5], 80, 16)      # res_block shortcut
    wd, bd = _linear(ks[6], 16, 1)       # decoder linear
    return dict(
        conv_w=conv_w, conv_b=conv_b,
        wp=wp, bp=bp,
        ln1_g=jnp.ones((80,), jnp.float32), ln1_b=jnp.zeros((80,), jnp.float32),
        w1=w1, b1=b1,
        ln2_g=jnp.ones((32,), jnp.float32), ln2_b=jnp.zeros((32,), jnp.float32),
        w2=w2, b2=b2,
        ws=ws, bs=bs,
        ln3_g=jnp.ones((16,), jnp.float32), ln3_b=jnp.zeros((16,), jnp.float32),
        wd=wd, bd=bd,
    )


if __name__ == "__main__":
    B, H, W = 2, 16, 16
    key = jax.random.PRNGKey(0)
    kd, kp, kparam = jax.random.split(key, 3)
    depth = jax.random.uniform(kd, (B, 1, H, W), jnp.float32, 0.3, 1.2)
    pose = jax.random.normal(kp, (B, 3, H, W), jnp.float32)
    params = init_params(kparam)

    out = jax.block_until_ready(suction_quality_forward(depth, pose, params))
    ref = jax.block_until_ready(
        suction_quality_forward(depth, pose, params, use_pallas=False))

    assert out.shape == (B, 1, H, W) and out.dtype == jnp.float32
    assert bool(jnp.all(jnp.isfinite(out)))
    assert bool(jnp.allclose(out, ref, atol=5e-2, rtol=1e-1))
    print("KERNEL_OK")
</pallas_src>

<mosaic_0001>
module attributes {stable_mosaic.version = 11 : i64} {
  func.func @head_kernel(%arg0: i32, %arg1: i32, %arg2: memref<1x3x256xf32, #tpu.memory_space<vmem>>, %arg3: memref<1x64x256xbf16, #tpu.memory_space<vmem>>, %arg4: memref<80x128xf32, #tpu.memory_space<vmem>>, %arg5: memref<32x16xbf16, #tpu.memory_space<vmem>>, %arg6: memref<32x64xbf16, #tpu.memory_space<vmem>>, %arg7: memref<16x32xbf16, #tpu.memory_space<vmem>>, %arg8: memref<16x16xbf16, #tpu.memory_space<vmem>>, %arg9: memref<16x64xbf16, #tpu.memory_space<vmem>>, %arg10: memref<1x1x256xf32, #tpu.memory_space<vmem>>) attributes {dimension_semantics = [#tpu.dimension_semantics<parallel>, #tpu.dimension_semantics<parallel>], iteration_bounds = array<i64: 2, 1>, scalar_prefetch = 0 : i64, scratch_operands = 0 : i64, tpu.core_type = #tpu.core_type<tc>, window_params = [{transform_indices = @transform_0, window_bounds = array<i64: 1, 3, 256>}, {transform_indices = @transform_1, window_bounds = array<i64: 1, 64, 256>}, {pipeline_mode = #tpu.pipeline_mode<synchronous>, transform_indices = @transform_2, window_bounds = array<i64: 80, 128>}, {pipeline_mode = #tpu.pipeline_mode<synchronous>, transform_indices = @transform_3, window_bounds = array<i64: 32, 16>}, {pipeline_mode = #tpu.pipeline_mode<synchronous>, transform_indices = @transform_4, window_bounds = array<i64: 32, 64>}, {pipeline_mode = #tpu.pipeline_mode<synchronous>, transform_indices = @transform_5, window_bounds = array<i64: 16, 32>}, {pipeline_mode = #tpu.pipeline_mode<synchronous>, transform_indices = @transform_6, window_bounds = array<i64: 16, 16>}, {pipeline_mode = #tpu.pipeline_mode<synchronous>, transform_indices = @transform_7, window_bounds = array<i64: 16, 64>}, {transform_indices = @transform_8, window_bounds = array<i64: 1, 1, 256>}]} {
    %c0 = arith.constant 0 : index
    %c0_0 = arith.constant 0 : index
    %c0_1 = arith.constant 0 : index
    %0 = vector.load %arg2[%c0, %c0_0, %c0_1] : memref<1x3x256xf32, #tpu.memory_space<vmem>>, vector<1x3x256xf32>
    %1 = vector.shape_cast %0 : vector<1x3x256xf32> to vector<3x256xf32>
    %c0_2 = arith.constant 0 : index
    %c0_3 = arith.constant 0 : index
    %c0_4 = arith.constant 0 : index
    %2 = vector.load %arg3[%c0_2, %c0_3, %c0_4] : memref<1x64x256xbf16, #tpu.memory_space<vmem>>, vector<1x64x256xbf16>
    %3 = vector.shape_cast %2 : vector<1x64x256xbf16> to vector<64x256xbf16>
    %4 = arith.extf %3 : vector<64x256xbf16> to vector<64x256xf32>
    %c0_5 = arith.constant 0 : index
    %c0_6 = arith.constant 0 : index
    %5 = vector.load %arg4[%c0_5, %c0_6] : memref<80x128xf32, #tpu.memory_space<vmem>>, vector<80x128xf32>
    %6 = vector.extract_strided_slice %5 {offsets = [0, 0], sizes = [16, 1], strides = [1, 1]} : vector<80x128xf32> to vector<16x1xf32>
    %7 = vector.extract_strided_slice %5 {offsets = [0, 1], sizes = [16, 1], strides = [1, 1]} : vector<80x128xf32> to vector<16x1xf32>
    %8 = vector.extract_strided_slice %5 {offsets = [0, 2], sizes = [16, 1], strides = [1, 1]} : vector<80x128xf32> to vector<16x1xf32>
    %9 = vector.extract_strided_slice %5 {offsets = [0, 3], sizes = [16, 1], strides = [1, 1]} : vector<80x128xf32> to vector<16x1xf32>
    %10 = vector.extract_strided_slice %5 {offsets = [0, 4], sizes = [16, 1], strides = [1, 1]} : vector<80x128xf32> to vector<16x1xf32>
    %11 = vector.extract_strided_slice %5 {offsets = [0, 5], sizes = [16, 1], strides = [1, 1]} : vector<80x128xf32> to vector<16x1xf32>
    %12 = vector.extract_strided_slice %5 {offsets = [0, 6], sizes = [64, 1], strides = [1, 1]} : vector<80x128xf32> to vector<64x1xf32>
    %13 = vector.extract_strided_slice %5 {offsets = [0, 7], sizes = [64, 1], strides = [1, 1]} : vector<80x128xf32> to vector<64x1xf32>
    %14 = vector.extract_strided_slice %5 {offsets = [0, 8], sizes = [32, 1], strides = [1, 1]} : vector<80x128xf32> to vector<32x1xf32>
    %15 = vector.extract_strided_slice %5 {offsets = [0, 9], sizes = [32, 1], strides = [1, 1]} : vector<80x128xf32> to vector<32x1xf32>
    %16 = vector.extract_strided_slice %5 {offsets = [0, 10], sizes = [32, 1], strides = [1, 1]} : vector<80x128xf32> to vector<32x1xf32>
    %17 = vector.extract_strided_slice %5 {offsets = [0, 11], sizes = [16, 1], strides = [1, 1]} : vector<80x128xf32> to vector<16x1xf32>
    %18 = vector.extract_strided_slice %5 {offsets = [0, 12], sizes = [16, 1], strides = [1, 1]} : vector<80x128xf32> to vector<16x1xf32>
    %19 = vector.extract_strided_slice %5 {offsets = [0, 13], sizes = [16, 1], strides = [1, 1]} : vector<80x128xf32> to vector<16x1xf32>
    %20 = vector.extract_strided_slice %5 {offsets = [0, 14], sizes = [16, 1], strides = [1, 1]} : vector<80x128xf32> to vector<16x1xf32>
    %21 = vector.extract_strided_slice %5 {offsets = [0, 15], sizes = [16, 1], strides = [1, 1]} : vector<80x128xf32> to vector<16x1xf32>
    %22 = vector.extract_strided_slice %5 {offsets = [0, 16], sizes = [1, 1], strides = [1, 1]} : vector<80x128xf32> to vector<1x1xf32>
    %23 = vector.extract_strided_slice %1 {offsets = [0, 0], sizes = [1, 256], strides = [1, 1]} : vector<3x256xf32> to vector<1x256xf32>
    %24 = vector.broadcast %6 : vector<16x1xf32> to vector<16x256xf32>
    %25 = vector.broadcast %23 : vector<1x256xf32> to vector<16x256xf32>
    %26 = arith.mulf %24, %25 : vector<16x256xf32>
    %27 = vector.extract_strided_slice %1 {offsets = [1, 0], sizes = [1, 256], strides = [1, 1]} : vector<3x256xf32> to vector<1x256xf32>
    %28 = vector.broadcast %7 : vector<16x1xf32> to vector<16x256xf32>
    %29 = vector.broadcast %27 : vector<1x256xf32> to vector<16x256xf32>
    %30 = arith.mulf %28, %29 : vector<16x256xf32>
    %31 = arith.addf %26, %30 : vector<16x256xf32>
    %32 = vector.extract_strided_slice %1 {offsets = [2, 0], sizes = [1, 256], strides = [1, 1]} : vector<3x256xf32> to vector<1x256xf32>
    %33 = vector.broadcast %8 : vector<16x1xf32> to vector<16x256xf32>
    %34 = vector.broadcast %32 : vector<1x256xf32> to vector<16x256xf32>
    %35 = arith.mulf %33, %34 : vector<16x256xf32>
    %36 = arith.addf %31, %35 : vector<16x256xf32>
    %37 = vector.broadcast %9 : vector<16x1xf32> to vector<16x256xf32>
    %38 = arith.addf %36, %37 : vector<16x256xf32>
    %cst = arith.constant dense<0.000000e+00> : vector<256xf32>
    %39 = vector.multi_reduction <add>, %38, %cst [0] : vector<16x256xf32> to vector<256xf32>
    %40 = vector.shape_cast %39 : vector<256xf32> to vector<1x256xf32>
    %cst_7 = arith.constant dense<0.000000e+00> : vector<256xf32>
    %41 = vector.multi_reduction <add>, %4, %cst_7 [0] : vector<64x256xf32> to vector<256xf32>
    %42 = vector.shape_cast %41 : vector<256xf32> to vector<1x256xf32>
    %43 = arith.addf %40, %42 : vector<1x256xf32>
    %cst_8 = arith.constant 1.250000e-02 : f32
    %44 = vector.broadcast %cst_8 : f32 to vector<1x256xf32>
    %45 = arith.mulf %43, %44 : vector<1x256xf32>
    %46 = vector.broadcast %45 : vector<1x256xf32> to vector<16x256xf32>
    %47 = arith.subf %38, %46 : vector<16x256xf32>
    %48 = vector.broadcast %45 : vector<1x256xf32> to vector<64x256xf32>
    %49 = arith.subf %4, %48 : vector<64x256xf32>
    %50 = arith.mulf %47, %47 : vector<16x256xf32>
    %cst_9 = arith.constant dense<0.000000e+00> : vector<256xf32>
    %51 = vector.multi_reduction <add>, %50, %cst_9 [0] : vector<16x256xf32> to vector<256xf32>
    %52 = vector.shape_cast %51 : vector<256xf32> to vector<1x256xf32>
    %53 = arith.mulf %49, %49 : vector<64x256xf32>
    %cst_10 = arith.constant dense<0.000000e+00> : vector<256xf32>
    %54 = vector.multi_reduction <add>, %53, %cst_10 [0] : vector<64x256xf32> to vector<256xf32>
    %55 = vector.shape_cast %54 : vector<256xf32> to vector<1x256xf32>
    %56 = arith.addf %52, %55 : vector<1x256xf32>
    %cst_11 = arith.constant 1.250000e-02 : f32
    %57 = vector.broadcast %cst_11 : f32 to vector<1x256xf32>
    %58 = arith.mulf %56, %57 : vector<1x256xf32>
    %cst_12 = arith.constant 9.99999974E-6 : f32
    %59 = vector.broadcast %cst_12 : f32 to vector<1x256xf32>
    %60 = arith.addf %58, %59 : vector<1x256xf32>
    %61 = math.rsqrt %60 : vector<1x256xf32>
    %62 = vector.broadcast %61 : vector<1x256xf32> to vector<16x256xf32>
    %63 = arith.mulf %47, %62 : vector<16x256xf32>
    %64 = vector.broadcast %10 : vector<16x1xf32> to vector<16x256xf32>
    %65 = arith.mulf %63, %64 : vector<16x256xf32>
    %66 = vector.broadcast %11 : vector<16x1xf32> to vector<16x256xf32>
    %67 = arith.addf %65, %66 : vector<16x256xf32>
    %68 = arith.negf %67 : vector<16x256xf32>
    %69 = math.exp %68 : vector<16x256xf32>
    %cst_13 = arith.constant 1.000000e+00 : f32
    %70 = vector.broadcast %cst_13 : f32 to vector<16x256xf32>
    %71 = arith.addf %70, %69 : vector<16x256xf32>
    %72 = arith.divf %70, %71 : vector<16x256xf32>
    %73 = arith.mulf %67, %72 : vector<16x256xf32>
    %74 = vector.broadcast %61 : vector<1x256xf32> to vector<64x256xf32>
    %75 = arith.mulf %49, %74 : vector<64x256xf32>
    %76 = vector.broadcast %12 : vector<64x1xf32> to vector<64x256xf32>
    %77 = arith.mulf %75, %76 : vector<64x256xf32>
    %78 = vector.broadcast %13 : vector<64x1xf32> to vector<64x256xf32>
    %79 = arith.addf %77, %78 : vector<64x256xf32>
    %80 = arith.negf %79 : vector<64x256xf32>
    %81 = math.exp %80 : vector<64x256xf32>
    %cst_14 = arith.constant 1.000000e+00 : f32
    %82 = vector.broadcast %cst_14 : f32 to vector<64x256xf32>
    %83 = arith.addf %82, %81 : vector<64x256xf32>
    %84 = arith.divf %82, %83 : vector<64x256xf32>
    %85 = arith.mulf %79, %84 : vector<64x256xf32>
    %c0_15 = arith.constant 0 : index
    %c0_16 = arith.constant 0 : index
    %86 = vector.load %arg5[%c0_15, %c0_16] : memref<32x16xbf16, #tpu.memory_space<vmem>>, vector<32x16xbf16>
    %87 = arith.truncf %73 : vector<16x256xf32> to vector<16x256xbf16>
    %cst_17 = arith.constant dense<0.000000e+00> : vector<32x256xf32>
    %88 = tpu.matmul %86, %87, %cst_17 {dimension_numbers = #tpu.dot_dimension_numbers<[1], [0], [0], [1], [0, 0, 1, 1], [], []>} : vector<32x16xbf16>, vector<16x256xbf16>, vector<32x256xf32> -> vector<32x256xf32>
    %c0_18 = arith.constant 0 : index
    %c0_19 = arith.constant 0 : index
    %89 = vector.load %arg6[%c0_18, %c0_19] : memref<32x64xbf16, #tpu.memory_space<vmem>>, vector<32x64xbf16>
    %90 = arith.truncf %85 : vector<64x256xf32> to vector<64x256xbf16>
    %cst_20 = arith.constant dense<0.000000e+00> : vector<32x256xf32>
    %91 = tpu.matmul %89, %90, %cst_20 {dimension_numbers = #tpu.dot_dimension_numbers<[1], [0], [0], [1], [0, 0, 1, 1], [], []>} : vector<32x64xbf16>, vector<64x256xbf16>, vector<32x256xf32> -> vector<32x256xf32>
    %92 = arith.addf %88, %91 : vector<32x256xf32>
    %93 = vector.broadcast %14 : vector<32x1xf32> to vector<32x256xf32>
    %94 = arith.addf %92, %93 : vector<32x256xf32>
    %cst_21 = arith.constant dense<0.000000e+00> : vector<256xf32>
    %95 = vector.multi_reduction <add>, %94, %cst_21 [0] : vector<32x256xf32> to vector<256xf32>
    %96 = vector.shape_cast %95 : vector<256xf32> to vector<1x256xf32>
    %cst_22 = arith.constant 3.200000e+01 : f32
    %97 = vector.broadcast %cst_22 : f32 to vector<1x256xf32>
    %98 = arith.divf %96, %97 : vector<1x256xf32>
    %99 = vector.broadcast %98 : vector<1x256xf32> to vector<32x256xf32>
    %100 = arith.subf %94, %99 : vector<32x256xf32>
    %101 = arith.mulf %100, %100 : vector<32x256xf32>
    %cst_23 = arith.constant dense<0.000000e+00> : vector<256xf32>
    %102 = vector.multi_reduction <add>, %101, %cst_23 [0] : vector<32x256xf32> to vector<256xf32>
    %103 = vector.shape_cast %102 : vector<256xf32> to vector<1x256xf32>
    %cst_24 = arith.constant 3.200000e+01 : f32
    %104 = vector.broadcast %cst_24 : f32 to vector<1x256xf32>
    %105 = arith.divf %103, %104 : vector<1x256xf32>
    %cst_25 = arith.constant 9.99999974E-6 : f32
    %106 = vector.broadcast %cst_25 : f32 to vector<1x256xf32>
    %107 = arith.addf %105, %106 : vector<1x256xf32>
    %108 = math.rsqrt %107 : vector<1x256xf32>
    %109 = vector.broadcast %108 : vector<1x256xf32> to vector<32x256xf32>
    %110 = arith.mulf %100, %109 : vector<32x256xf32>
    %111 = vector.broadcast %15 : vector<32x1xf32> to vector<32x256xf32>
    %112 = arith.mulf %110, %111 : vector<32x256xf32>
    %113 = vector.broadcast %16 : vector<32x1xf32> to vector<32x256xf32>
    %114 = arith.addf %112, %113 : vector<32x256xf32>
    %115 = arith.negf %114 : vector<32x256xf32>
    %116 = math.exp %115 : vector<32x256xf32>
    %cst_26 = arith.constant 1.000000e+00 : f32
    %117 = vector.broadcast %cst_26 : f32 to vector<32x256xf32>
    %118 = arith.addf %117, %116 : vector<32x256xf32>
    %119 = arith.divf %117, %118 : vector<32x256xf32>
    %120 = arith.mulf %114, %119 : vector<32x256xf32>
    %c0_27 = arith.constant 0 : index
    %c0_28 = arith.constant 0 : index
    %121 = vector.load %arg7[%c0_27, %c0_28] : memref<16x32xbf16, #tpu.memory_space<vmem>>, vector<16x32xbf16>
    %122 = arith.truncf %120 : vector<32x256xf32> to vector<32x256xbf16>
    %cst_29 = arith.constant dense<0.000000e+00> : vector<16x256xf32>
    %123 = tpu.matmul %121, %122, %cst_29 {dimension_numbers = #tpu.dot_dimension_numbers<[1], [0], [0], [1], [0, 0, 1, 1], [], []>} : vector<16x32xbf16>, vector<32x256xbf16>, vector<16x256xf32> -> vector<16x256xf32>
    %124 = vector.broadcast %17 : vector<16x1xf32> to vector<16x256xf32>
    %125 = arith.addf %123, %124 : vector<16x256xf32>
    %c0_30 = arith.constant 0 : index
    %c0_31 = arith.constant 0 : index
    %126 = vector.load %arg8[%c0_30, %c0_31] : memref<16x16xbf16, #tpu.memory_space<vmem>>, vector<16x16xbf16>
    %127 = arith.truncf %38 : vector<16x256xf32> to vector<16x256xbf16>
    %cst_32 = arith.constant dense<0.000000e+00> : vector<16x256xf32>
    %128 = tpu.matmul %126, %127, %cst_32 {dimension_numbers = #tpu.dot_dimension_numbers<[1], [0], [0], [1], [0, 0, 1, 1], [], []>} : vector<16x16xbf16>, vector<16x256xbf16>, vector<16x256xf32> -> vector<16x256xf32>
    %c0_33 = arith.constant 0 : index
    %c0_34 = arith.constant 0 : index
    %129 = vector.load %arg9[%c0_33, %c0_34] : memref<16x64xbf16, #tpu.memory_space<vmem>>, vector<16x64xbf16>
    %cst_35 = arith.constant dense<0.000000e+00> : vector<16x256xf32>
    %130 = tpu.matmul %129, %3, %cst_35 {dimension_numbers = #tpu.dot_dimension_numbers<[1], [0], [0], [1], [0, 0, 1, 1], [], []>} : vector<16x64xbf16>, vector<64x256xbf16>, vector<16x256xf32> -> vector<16x256xf32>
    %131 = arith.addf %128, %130 : vector<16x256xf32>
    %132 = vector.broadcast %18 : vector<16x1xf32> to vector<16x256xf32>
    %133 = arith.addf %131, %132 : vector<16x256xf32>
    %134 = arith.addf %125, %133 : vector<16x256xf32>
    %cst_36 = arith.constant dense<0.000000e+00> : vector<256xf32>
    %135 = vector.multi_reduction <add>, %134, %cst_36 [0] : vector<16x256xf32> to vector<256xf32>
    %136 = vector.shape_cast %135 : vector<256xf32> to vector<1x256xf32>
    %cst_37 = arith.constant 1.600000e+01 : f32
    %137 = vector.broadcast %cst_37 : f32 to vector<1x256xf32>
    %138 = arith.divf %136, %137 : vector<1x256xf32>
    %139 = vector.broadcast %138 : vector<1x256xf32> to vector<16x256xf32>
    %140 = arith.subf %134, %139 : vector<16x256xf32>
    %141 = arith.mulf %140, %140 : vector<16x256xf32>
    %cst_38 = arith.constant dense<0.000000e+00> : vector<256xf32>
    %142 = vector.multi_reduction <add>, %141, %cst_38 [0] : vector<16x256xf32> to vector<256xf32>
    %143 = vector.shape_cast %142 : vector<256xf32> to vector<1x256xf32>
    %cst_39 = arith.constant 1.600000e+01 : f32
    %144 = vector.broadcast %cst_39 : f32 to vector<1x256xf32>
    %145 = arith.divf %143, %144 : vector<1x256xf32>
    %cst_40 = arith.constant 9.99999974E-6 : f32
    %146 = vector.broadcast %cst_40 : f32 to vector<1x256xf32>
    %147 = arith.addf %145, %146 : vector<1x256xf32>
    %148 = math.rsqrt %147 : vector<1x256xf32>
    %149 = vector.broadcast %148 : vector<1x256xf32> to vector<16x256xf32>
    %150 = arith.mulf %140, %149 : vector<16x256xf32>
    %151 = vector.broadcast %19 : vector<16x1xf32> to vector<16x256xf32>
    %152 = arith.mulf %150, %151 : vector<16x256xf32>
    %153 = vector.broadcast %20 : vector<16x1xf32> to vector<16x256xf32>
    %154 = arith.addf %152, %153 : vector<16x256xf32>
    %155 = arith.negf %154 : vector<16x256xf32>
    %156 = math.exp %155 : vector<16x256xf32>
    %cst_41 = arith.constant 1.000000e+00 : f32
    %157 = vector.broadcast %cst_41 : f32 to vector<16x256xf32>
    %158 = arith.addf %157, %156 : vector<16x256xf32>
    %159 = arith.divf %157, %158 : vector<16x256xf32>
    %160 = arith.mulf %154, %159 : vector<16x256xf32>
    %161 = vector.broadcast %21 : vector<16x1xf32> to vector<16x256xf32>
    %162 = arith.mulf %160, %161 : vector<16x256xf32>
    %cst_42 = arith.constant dense<0.000000e+00> : vector<256xf32>
    %163 = vector.multi_reduction <add>, %162, %cst_42 [0] : vector<16x256xf32> to vector<256xf32>
    %164 = vector.shape_cast %163 : vector<256xf32> to vector<1x256xf32>
    %165 = vector.broadcast %22 : vector<1x1xf32> to vector<1x256xf32>
    %166 = arith.addf %164, %165 : vector<1x256xf32>
    %c0_43 = arith.constant 0 : index
    %c0_44 = arith.constant 0 : index
    %c0_45 = arith.constant 0 : index
    %167 = vector.load %arg10[%c0_43, %c0_44, %c0_45] : memref<1x1x256xf32, #tpu.memory_space<vmem>>, vector<1x1x256xf32>
    %168 = vector.shape_cast %167 : vector<1x1x256xf32> to vector<1x256xf32>
    %169 = vector.shape_cast %166 : vector<1x256xf32> to vector<1x1x256xf32>
    tpu.vector_store %arg10[%c0_43, %c0_44, %c0_45], %169 {strides = array<i32>} : memref<1x1x256xf32, #tpu.memory_space<vmem>>, vector<1x1x256xf32>,
    return
  }
  func.func @transform_0(%arg0: i32, %arg1: i32) -> (i32, i32, i32) {
    %c0_i32 = arith.constant 0 : i32
    %c0_i32_0 = arith.constant 0 : i32
    return %arg0, %c0_i32, %arg1 : i32, i32, i32
  }
  func.func @transform_1(%arg0: i32, %arg1: i32) -> (i32, i32, i32) {
    %c0_i32 = arith.constant 0 : i32
    %c0_i32_0 = arith.constant 0 : i32
    return %arg0, %c0_i32, %arg1 : i32, i32, i32
  }
  func.func @transform_2(%arg0: i32, %arg1: i32) -> (i32, i32) {
    %c0_i32 = arith.constant 0 : i32
    %c0_i32_0 = arith.constant 0 : i32
    %c0_i32_1 = arith.constant 0 : i32
    return %c0_i32, %c0_i32_0 : i32, i32
  }
  func.func @transform_3(%arg0: i32, %arg1: i32) -> (i32, i32) {
    %c0_i32 = arith.constant 0 : i32
    %c0_i32_0 = arith.constant 0 : i32
    %c0_i32_1 = arith.constant 0 : i32
    return %c0_i32, %c0_i32_0 : i32, i32
  }
  func.func @transform_4(%arg0: i32, %arg1: i32) -> (i32, i32) {
    %c0_i32 = arith.constant 0 : i32
    %c0_i32_0 = arith.constant 0 : i32
    %c0_i32_1 = arith.constant 0 : i32
    return %c0_i32, %c0_i32_0 : i32, i32
  }
  func.func @transform_5(%arg0: i32, %arg1: i32) -> (i32, i32) {
    %c0_i32 = arith.constant 0 : i32
    %c0_i32_0 = arith.constant 0 : i32
    %c0_i32_1 = arith.constant 0 : i32
    return %c0_i32, %c0_i32_0 : i32, i32
  }
  func.func @transform_6(%arg0: i32, %arg1: i32) -> (i32, i32) {
    %c0_i32 = arith.constant 0 : i32
    %c0_i32_0 = arith.constant 0 : i32
    %c0_i32_1 = arith.constant 0 : i32
    return %c0_i32, %c0_i32_0 : i32, i32
  }
  func.func @transform_7(%arg0: i32, %arg1: i32) -> (i32, i32) {
    %c0_i32 = arith.constant 0 : i32
    %c0_i32_0 = arith.constant 0 : i32
    %c0_i32_1 = arith.constant 0 : i32
    return %c0_i32, %c0_i32_0 : i32, i32
  }
  func.func @transform_8(%arg0: i32, %arg1: i32) -> (i32, i32, i32) {
    %c0_i32 = arith.constant 0 : i32
    %c0_i32_0 = arith.constant 0 : i32
    return %arg0, %c0_i32, %arg1 : i32, i32, i32
  }
}

</mosaic_0001>

<llo_original>
// kernel: suction_quality_forward.1
$region0: #{suction_quality_forward.1}
  #allocation0 [shape = 'u32[]', space=smem, size = 0x4, offset = 0x4, fixed_abs, tag = 'smem constant byte address 0x4 - core index']
  #allocation1 [shape = 'u32[72,128]{1,0:T(1,128)}', space=vmem, size = 0x9000, scoped, tag = 'internal scratch']
  %s0 = inlined_call_operand.vmem [shape: f32[2,3,256], index: 0, kind: input, shape index: {}]
  %s1 = inlined_call_operand.vmem [shape: bf16[2,64,256], index: 1, kind: input, shape index: {}]
  %s2 = inlined_call_operand.vmem [shape: f32[80,128], index: 2, kind: input, shape index: {}]
  %s3 = inlined_call_operand.vmem [shape: bf16[32,16], index: 3, kind: input, shape index: {}]
  %s4 = inlined_call_operand.vmem [shape: bf16[32,64], index: 4, kind: input, shape index: {}]
  %s5 = inlined_call_operand.vmem [shape: bf16[16,32], index: 5, kind: input, shape index: {}]
  %s6 = inlined_call_operand.vmem [shape: bf16[16,16], index: 6, kind: input, shape index: {}]
  %s7 = inlined_call_operand.vmem [shape: bf16[16,64], index: 7, kind: input, shape index: {}]
  %s8 = inlined_call_operand.vmem [shape: f32[2,1,256], index: 8, kind: output, shape index: {}]
  %s9 = sld [smem:[#allocation0]]
  $region65: #{suction_quality_forward.1} parent=0
    _
  %s11 = ssub.s32 1, %s9
  %s12 = scalar_select 0, %s11, %s9
  loop: start=0, step=1, limit=4
  $region2: #{suction_quality_forward.1} parent=0 // loop_pre_header
    _
  $region3: #{suction_quality_forward.1} parent=0 // loop_header
    %s14 = sphi 0, %s18
    %p15 = scmp.ge.s32.totalorder %s14, 4
    %s21 = sphi 0, %s33
    %s22 = sphi 0, %s29
    %s23 = sphi 0, %s21
    %s24 = sphi 0, %s22
    %s25 = sphi 0, %s23
    %s26 = sphi 0, %s24
    %s38 = sphi 0, %s40
    %s41 = sphi 0, %s38
    %s42 = sphi 0, %s41
    %s58 = sphi 0, %s42
    %s66 = sphi 0, %s68
    %s69 = sphi 0, %s66
    %s70 = sphi 0, %s69
    %s86 = sphi 0, %s70
    %s90 = sphi 0, %s90
    %s92 = sphi 0, %s90
    %s93 = sphi 0, %s92
    %s107 = sphi 0, %s93
    %s111 = sphi 0, %s111
    %s113 = sphi 0, %s111
    %s114 = sphi 0, %s113
    %s128 = sphi 0, %s114
    %s132 = sphi 0, %s132
    %s134 = sphi 0, %s132
    %s135 = sphi 0, %s134
    %s149 = sphi 0, %s135
    %s153 = sphi 0, %s153
    %s155 = sphi 0, %s153
    %s156 = sphi 0, %s155
    %s170 = sphi 0, %s156
    %s174 = sphi 0, %s174
    %s176 = sphi 0, %s174
    %s177 = sphi 0, %s176
    %s191 = sphi 0, %s177
    %s195 = sphi 0, %s195
    %s197 = sphi 0, %s195
    %s198 = sphi 0, %s197
    %s212 = sphi 0, %s198
    %s220 = sphi 0, %s222
    %s223 = sphi 0, %s220
    %s224 = sphi 0, %s223
    %s240 = sphi 0, %s224
  $region4: #{suction_quality_forward.1} parent=0 // loop_header_branch
    %17 = sbr.rel (%p15) target = $region8
  $region5: #{suction_quality_forward.1} parent=0 // loop_body
    %s19 = ssub.s32 %s14, 1
    %s20 = ssub.s32 %s14, 2
    %s27 = sadd.s32 1, %s22
    %p28 = scmp.ge.s32.totalorder %s27, 1
    %s29 = scalar_select %p28, 0, %s27
    %s30 = sadd.s32 1, %s21
    %s31 = scalar_select %p28, %s30, %s21
    %p32 = scmp.ge.s32.totalorder %s31, 2
    %s33 = scalar_select %p32, 0, %s31
    %s34 = ssub.s32 %s21, %s33
    %s35 = ssub.s32 %s22, %s29
    %s36 = sor.u32 %s34, %s35
    %p37 = scmp.eq.s32.totalorder %s36, 0
    %s39 = sadd.s32 %s38, 1
    %s40 = scalar_select %p37, %s38, %s39
    %p43 = pneg %p37
    %p44 = scmp.eq.s32.totalorder %s14, 1
    %p45 = por %p43, %p44
    %p46 = scmp.ne.s32.totalorder %s38, %s41
    %p47 = scmp.eq.s32.totalorder %s14, 0
    %p48 = por %p46, %p47
    %p49 = scmp.ne.s32.totalorder %s38, %s41
    %p50 = scmp.eq.s32.totalorder %s19, 1
    %p51 = por %p49, %p50
    %p52 = scmp.ne.s32.totalorder %s41, %s42
    %p53 = scmp.eq.s32.totalorder %s19, 0
    %p54 = por %p52, %p53
    %p55 = scmp.ne.s32.totalorder %s41, %s42
    %p56 = scmp.eq.s32.totalorder %s20, 1
    %p57 = por %p55, %p56
    %p59 = scmp.ne.s32.totalorder %s42, %s58
    %p60 = scmp.eq.s32.totalorder %s20, 0
    %p61 = por %p59, %p60
    %s62 = ssub.s32 %s21, %s33
    %s63 = ssub.s32 %s22, %s29
    %s64 = sor.u32 %s62, %s63
    %p65 = scmp.eq.s32.totalorder %s64, 0
    %s67 = sadd.s32 %s66, 1
    %s68 = scalar_select %p65, %s66, %s67
    %p71 = pneg %p65
    %p72 = scmp.eq.s32.totalorder %s14, 1
    %p73 = por %p71, %p72
    %p74 = scmp.ne.s32.totalorder %s66, %s69
    %p75 = scmp.eq.s32.totalorder %s14, 0
    %p76 = por %p74, %p75
    %p77 = scmp.ne.s32.totalorder %s66, %s69
    %p78 = scmp.eq.s32.totalorder %s19, 1
    %p79 = por %p77, %p78
    %p80 = scmp.ne.s32.totalorder %s69, %s70
    %p81 = scmp.eq.s32.totalorder %s19, 0
    %p82 = por %p80, %p81
    %p83 = scmp.ne.s32.totalorder %s69, %s70
    %p84 = scmp.eq.s32.totalorder %s20, 1
    %p85 = por %p83, %p84
    %p87 = scmp.ne.s32.totalorder %s70, %s86
    %p88 = scmp.eq.s32.totalorder %s20, 0
    %p89 = por %p87, %p88
    %s91 = sadd.s32 %s90, 1
    %p94 = scmp.eq.s32.totalorder %s14, 1
    %p95 = scmp.ne.s32.totalorder %s90, %s92
    %p96 = scmp.eq.s32.totalorder %s14, 0
    %p97 = por %p95, %p96
    %p98 = scmp.ne.s32.totalorder %s90, %s92
    %p99 = scmp.eq.s32.totalorder %s19, 1
    %p100 = por %p98, %p99
    %p101 = scmp.ne.s32.totalorder %s92, %s93
    %p102 = scmp.eq.s32.totalorder %s19, 0
    %p103 = por %p101, %p102
    %p104 = scmp.ne.s32.totalorder %s92, %s93
    %p105 = scmp.eq.s32.totalorder %s20, 1
    %p106 = por %p104, %p105
    %p108 = scmp.ne.s32.totalorder %s93, %s107
    %p109 = scmp.eq.s32.totalorder %s20, 0
    %p110 = por %p108, %p109
    %s112 = sadd.s32 %s111, 1
    %p115 = scmp.eq.s32.totalorder %s14, 1
    %p116 = scmp.ne.s32.totalorder %s111, %s113
    %p117 = scmp.eq.s32.totalorder %s14, 0
    %p118 = por %p116, %p117
    %p119 = scmp.ne.s32.totalorder %s111, %s113
    %p120 = scmp.eq.s32.totalorder %s19, 1
    %p121 = por %p119, %p120
    %p122 = scmp.ne.s32.totalorder %s113, %s114
    %p123 = scmp.eq.s32.totalorder %s19, 0
    %p124 = por %p122, %p123
    %p125 = scmp.ne.s32.totalorder %s113, %s114
    %p126 = scmp.eq.s32.totalorder %s20, 1
    %p127 = por %p125, %p126
    %p129 = scmp.ne.s32.totalorder %s114, %s128
    %p130 = scmp.eq.s32.totalorder %s20, 0
    %p131 = por %p129, %p130
    %s133 = sadd.s32 %s132, 1
    %p136 = scmp.eq.s32.totalorder %s14, 1
    %p137 = scmp.ne.s32.totalorder %s132, %s134
    %p138 = scmp.eq.s32.totalorder %s14, 0
    %p139 = por %p137, %p138
    %p140 = scmp.ne.s32.totalorder %s132, %s134
    %p141 = scmp.eq.s32.totalorder %s19, 1
    %p142 = por %p140, %p141
    %p143 = scmp.ne.s32.totalorder %s134, %s135
    %p144 = scmp.eq.s32.totalorder %s19, 0
    %p145 = por %p143, %p144
    %p146 = scmp.ne.s32.totalorder %s134, %s135
    %p147 = scmp.eq.s32.totalorder %s20, 1
    %p148 = por %p146, %p147
    %p150 = scmp.ne.s32.totalorder %s135, %s149
    %p151 = scmp.eq.s32.totalorder %s20, 0
    %p152 = por %p150, %p151
    %s154 = sadd.s32 %s153, 1
    %p157 = scmp.eq.s32.totalorder %s14, 1
    %p158 = scmp.ne.s32.totalorder %s153, %s155
    %p159 = scmp.eq.s32.totalorder %s14, 0
    %p160 = por %p158, %p159
    %p161 = scmp.ne.s32.totalorder %s153, %s155
    %p162 = scmp.eq.s32.totalorder %s19, 1
    %p163 = por %p161, %p162
    %p164 = scmp.ne.s32.totalorder %s155, %s156
    %p165 = scmp.eq.s32.totalorder %s19, 0
    %p166 = por %p164, %p165
    %p167 = scmp.ne.s32.totalorder %s155, %s156
    %p168 = scmp.eq.s32.totalorder %s20, 1
    %p169 = por %p167, %p168
    %p171 = scmp.ne.s32.totalorder %s156, %s170
    %p172 = scmp.eq.s32.totalorder %s20, 0
    %p173 = por %p171, %p172
    %s175 = sadd.s32 %s174, 1
    %p178 = scmp.eq.s32.totalorder %s14, 1
    %p179 = scmp.ne.s32.totalorder %s174, %s176
    %p180 = scmp.eq.s32.totalorder %s14, 0
    %p181 = por %p179, %p180
    %p182 = scmp.ne.s32.totalorder %s174, %s176
    %p183 = scmp.eq.s32.totalorder %s19, 1
    %p184 = por %p182, %p183
    %p185 = scmp.ne.s32.totalorder %s176, %s177
    %p186 = scmp.eq.s32.totalorder %s19, 0
    %p187 = por %p185, %p186
    %p188 = scmp.ne.s32.totalorder %s176, %s177
    %p189 = scmp.eq.s32.totalorder %s20, 1
    %p190 = por %p188, %p189
    %p192 = scmp.ne.s32.totalorder %s177, %s191
    %p193 = scmp.eq.s32.totalorder %s20, 0
    %p194 = por %p192, %p193
    %s196 = sadd.s32 %s195, 1
    %p199 = scmp.eq.s32.totalorder %s14, 1
    %p200 = scmp.ne.s32.totalorder %s195, %s197
    %p201 = scmp.eq.s32.totalorder %s14, 0
    %p202 = por %p200, %p201
    %p203 = scmp.ne.s32.totalorder %s195, %s197
    %p204 = scmp.eq.s32.totalorder %s19, 1
    %p205 = por %p203, %p204
    %p206 = scmp.ne.s32.totalorder %s197, %s198
    %p207 = scmp.eq.s32.totalorder %s19, 0
    %p208 = por %p206, %p207
    %p209 = scmp.ne.s32.totalorder %s197, %s198
    %p210 = scmp.eq.s32.totalorder %s20, 1
    %p211 = por %p209, %p210
    %p213 = scmp.ne.s32.totalorder %s198, %s212
    %p214 = scmp.eq.s32.totalorder %s20, 0
    %p215 = por %p213, %p214
    %s216 = ssub.s32 %s21, %s33
    %s217 = ssub.s32 %s22, %s29
    %s218 = sor.u32 %s216, %s217
    %p219 = scmp.eq.s32.totalorder %s218, 0
    %s221 = sadd.s32 %s220, 1
    %s222 = scalar_select %p219, %s220, %s221
    %p225 = pneg %p219
    %p226 = scmp.eq.s32.totalorder %s14, 1
    %p227 = por %p225, %p226
    %p228 = scmp.ne.s32.totalorder %s220, %s223
    %p229 = scmp.eq.s32.totalorder %s14, 0
    %p230 = por %p228, %p229
    %p231 = scmp.ne.s32.totalorder %s220, %s223
    %p232 = scmp.eq.s32.totalorder %s19, 1
    %p233 = por %p231, %p232
    %p234 = scmp.ne.s32.totalorder %s223, %s224
    %p235 = scmp.eq.s32.totalorder %s19, 0
    %p236 = por %p234, %p235
    %p237 = scmp.ne.s32.totalorder %s223, %s224
    %p238 = scmp.eq.s32.totalorder %s20, 1
    %p239 = por %p237, %p238
    %p241 = scmp.ne.s32.totalorder %s224, %s240
    %p242 = scmp.eq.s32.totalorder %s20, 0
    %p243 = por %p241, %p242
    %p244 = scmp.le.s32.totalorder 1, %s14
    %p245 = scmp.lt.s32.totalorder %s14, 3
    %p246 = pnand %p244, %p245
    %p247 = pneg %p246
    // Predicated region
    $region9: #{suction_quality_forward.1} parent=5 // pred_check
      _
    $region10: #{suction_quality_forward.1} parent=5 // pred_check_branch
      %249 = sbr.rel (%p246) target = $region12
    $region11: #{suction_quality_forward.1} parent=5 // pred_region
      %s250 = ssub.s32 %s14, 1
      // Predicated region
      $region13: #{suction_quality_forward.1} parent=11 // pred_check
        %p251 = pneg %p103
      $region14: #{suction_quality_forward.1} parent=11 // pred_check_branch
        %253 = sbr.rel (%p251) target = $region16
      $region15: #{suction_quality_forward.1} parent=11 // pred_region
        _
      $region16: #{suction_quality_forward.1} parent=11 // pred_fallthru
        _
      // Predicated region
      $region17: #{suction_quality_forward.1} parent=11 // pred_check
        %p254 = pneg %p124
      $region18: #{suction_quality_forward.1} parent=11 // pred_check_branch
        %256 = sbr.rel (%p254) target = $region20
      $region19: #{suction_quality_forward.1} parent=11 // pred_region
        _
      $region20: #{suction_quality_forward.1} parent=11 // pred_fallthru
        _
      // Predicated region
      $region21: #{suction_quality_forward.1} parent=11 // pred_check
        %p257 = pneg %p145
      $region22: #{suction_quality_forward.1} parent=11 // pred_check_branch
        %259 = sbr.rel (%p257) target = $region24
      $region23: #{suction_quality_forward.1} parent=11 // pred_region
        _
      $region24: #{suction_quality_forward.1} parent=11 // pred_fallthru
        _
      // Predicated region
      $region25: #{suction_quality_forward.1} parent=11 // pred_check
        %p260 = pneg %p166
      $region26: #{suction_quality_forward.1} parent=11 // pred_check_branch
        %262 = sbr.rel (%p260) target = $region28
      $region27: #{suction_quality_forward.1} parent=11 // pred_region
        _
      $region28: #{suction_quality_forward.1} parent=11 // pred_fallthru
        _
      // Predicated region
      $region29: #{suction_quality_forward.1} parent=11 // pred_check
        %p263 = pneg %p187
      $region30: #{suction_quality_forward.1} parent=11 // pred_check_branch
        %265 = sbr.rel (%p263) target = $region32
      $region31: #{suction_quality_forward.1} parent=11 // pred_region
        _
      $region32: #{suction_quality_forward.1} parent=11 // pred_fallthru
        _
      // Predicated region
      $region33: #{suction_quality_forward.1} parent=11 // pred_check
        %p266 = pneg %p208
      $region34: #{suction_quality_forward.1} parent=11 // pred_check_branch
        %268 = sbr.rel (%p266) target = $region36
      $region35: #{suction_quality_forward.1} parent=11 // pred_region
        _
      $region36: #{suction_quality_forward.1} parent=11 // pred_fallthru
        _
    $region12: #{suction_quality_forward.1} parent=5 // pred_fallthru
      _
    %p269 = scmp.lt.s32.totalorder %s14, 2
    // Predicated region
    $region37: #{suction_quality_forward.1} parent=5 // pred_check
      %p270 = pneg %p269
    $region38: #{suction_quality_forward.1} parent=5 // pred_check_branch
      %272 = sbr.rel (%p270) target = $region40
    $region39: #{suction_quality_forward.1} parent=5 // pred_region
      // Predicated region
      $region41: #{suction_quality_forward.1} parent=39 // pred_check
        %p273 = pneg %p48
      $region42: #{suction_quality_forward.1} parent=39 // pred_check_branch
        %275 = sbr.rel (%p273) target = $region44
      $region43: #{suction_quality_forward.1} parent=39 // pred_region
        %s276 = smul.u32 2, %s22
        %p277 = scmp.lt.s32.totalorder %s21, 1
        %s278 = scalar_select %p277, %s21, 1
        %p279 = scmp.lt.s32.totalorder %s276, 1
        %s280 = scalar_select %p279, %s276, 1
        %s281 = smul.addr %s278, 2
        %s282 = sadd.s32 %s280, %s281
        %s283 = smul.addr %s282, 4
        %s284 = scalar_lea.vmem %s0, %s283
        %s285 = smul.u32 2, %s22
      $region44: #{suction_quality_forward.1} parent=39 // pred_fallthru
        _
      // Predicated region
      $region45: #{suction_quality_forward.1} parent=39 // pred_check
        %p286 = pneg %p76
      $region46: #{suction_quality_forward.1} parent=39 // pred_check_branch
        %288 = sbr.rel (%p286) target = $region48
      $region47: #{suction_quality_forward.1} parent=39 // pred_region
        %s289 = smul.u32 2, %s22
        %p290 = scmp.lt.s32.totalorder %s21, 1
        %s291 = scalar_select %p290, %s21, 1
        %p292 = scmp.lt.s32.totalorder %s289, 1
        %s293 = scalar_select %p292, %s289, 1
        %s294 = smul.addr %s291, 16
        %s295 = sadd.s32 %s293, %s294
        %s296 = smul.addr %s295, 4
        %s297 = scalar_lea.vmem %s1, %s296
        %s298 = smul.u32 2, %s22
      $region48: #{suction_quality_forward.1} parent=39 // pred_fallthru
        _
    $region40: #{suction_quality_forward.1} parent=5 // pred_fallthru
      _
    %p299 = scmp.le.s32.totalorder 1, %s14
    %p300 = scmp.lt.s32.totalorder %s14, 3
    %p301 = pnand %p299, %p300
    %p302 = pneg %p301
    // Predicated region
    $region49: #{suction_quality_forward.1} parent=5 // pred_check
      _
    $region50: #{suction_quality_forward.1} parent=5 // pred_check_branch
      %304 = sbr.rel (%p301) target = $region52
    $region51: #{suction_quality_forward.1} parent=5 // pred_region
      %s305 = ssub.s32 %s14, 1
      %s306 = smul.u32 2, %s24
      %p307 = scmp.lt.s32.totalorder %s23, 1
      %s308 = scalar_select %p307, %s23, 1
      %p309 = scmp.lt.s32.totalorder %s306, 1
      %s310 = scalar_select %p309, %s306, 1
      %s311 = smul.addr %s308, 2
      %s312 = sadd.s32 %s310, %s311
      %s313 = smul.addr %s312, 4
      %s314 = scalar_lea.vmem %s0, %s313
      %p315 = pneg %p54
      %p316 = pneg %p51
      %s317 = smul.u32 2, %s24
      %p318 = scmp.lt.s32.totalorder %s23, 1
      %s319 = scalar_select %p318, %s23, 1
      %p320 = scmp.lt.s32.totalorder %s317, 1
      %s321 = scalar_select %p320, %s317, 1
      %s322 = smul.addr %s319, 16
      %s323 = sadd.s32 %s321, %s322
      %s324 = smul.addr %s323, 4
      %s325 = scalar_lea.vmem %s1, %s324
      %p326 = pneg %p82
      %p327 = pneg %p79
      %p328 = pneg %p103
      %p329 = pneg %p100
      %p330 = pneg %p124
      %p331 = pneg %p121
      %p332 = pneg %p145
      %p333 = pneg %p142
      %p334 = pneg %p166
      %p335 = pneg %p163
      %p336 = pneg %p187
      %p337 = pneg %p184
      %p338 = pneg %p208
      %p339 = pneg %p205
      %p340 = pneg %p236
      %p341 = pneg %p233
      %s342 = smul.u32 2, %s24
      %p343 = scmp.lt.s32.totalorder %s23, 1
      %s344 = scalar_select %p343, %s23, 1
      %p345 = scmp.lt.s32.totalorder %s342, 1
      %s346 = scalar_select %p345, %s342, 1
      %s347 = smul.addr %s344, 2
      %s348 = sadd.s32 %s346, %s347
      %s349 = scalar_lea.vmem %s8, %s348
      %s350 = smul.u32 2, %s24
      %p351 = scmp.lt.s32.totalorder %s23, 1
      %s352 = scalar_select %p351, %s23, 1
      %p353 = scmp.lt.s32.totalorder %s350, 1
      %s354 = scalar_select %p353, %s350, 1
      %s355 = smul.addr %s352, 2
      %s356 = sadd.s32 %s354, %s355
      %s357 = smul.addr %s356, 4
      %s358 = scalar_lea.vmem %s0, %s357
      %s359 = smul.u32 2, %s24
      %s360 = smul.u32 2, %s24
      %p361 = scmp.lt.s32.totalorder %s23, 1
      %s362 = scalar_select %p361, %s23, 1
      %p363 = scmp.lt.s32.totalorder %s360, 1
      %s364 = scalar_select %p363, %s360, 1
      %s365 = smul.addr %s362, 16
      %s366 = sadd.s32 %s364, %s365
      %s367 = smul.addr %s366, 4
      %s368 = scalar_lea.vmem %s1, %s367
      %s369 = smul.u32 2, %s24
      %s370 = smul.u32 2, %s24
      %p371 = scmp.lt.s32.totalorder %s23, 1
      %s372 = scalar_select %p371, %s23, 1
      %p373 = scmp.lt.s32.totalorder %s370, 1
      %s374 = scalar_select %p373, %s370, 1
      %s375 = smul.addr %s372, 2
      %s376 = sadd.s32 %s374, %s375
      %s377 = scalar_lea.vmem %s8, %s376
      %s378 = smul.u32 2, %s24
      %v380 = vld [vmem:[%s358] sm:$0x77]
      %v381 = vld [vmem:[%s368] sm:$0xff]
      %v382 = vld [vmem:[%s368 + $0x8] sm:$0xff]
      %v383 = vld [vmem:[%s368 + $0x10] sm:$0xff]
      %v384 = vld [vmem:[%s368 + $0x18] sm:$0xff]
      %v385 = vld [vmem:[%s368 + $0x20] sm:$0xff]
      %v386 = vld [vmem:[%s368 + $0x28] sm:$0xff]
      %v387 = vld [vmem:[%s368 + $0x30] sm:$0xff]
      %v388 = vld [vmem:[%s368 + $0x38] sm:$0xff]
      %v389 = vunpack.c.l.bf16 %v381
      %v390 = vunpack.c.h.bf16 %v381
      %v391 = vunpack.c.l.bf16 %v382
      %v392 = vunpack.c.h.bf16 %v382
      %v393 = vunpack.c.l.bf16 %v383
      %v394 = vunpack.c.h.bf16 %v383
      %v395 = vunpack.c.l.bf16 %v384
      %v396 = vunpack.c.h.bf16 %v384
      %v397 = vunpack.c.l.bf16 %v385
      %v398 = vunpack.c.h.bf16 %v385
      %v399 = vunpack.c.l.bf16 %v386
      %v400 = vunpack.c.h.bf16 %v386
      %v401 = vunpack.c.l.bf16 %v387
      %v402 = vunpack.c.h.bf16 %v387
      %v403 = vunpack.c.l.bf16 %v388
      %v404 = vunpack.c.h.bf16 %v388
      %v405 = vld [vmem:[%s2] sm:$0xff]
      %v406 = vld [vmem:[%s2 + $0x8] sm:$0xff]
      %v407 = vld [vmem:[%s2 + $0x10] sm:$0xff]
      %v408 = vld [vmem:[%s2 + $0x18] sm:$0xff]
      %v409 = vld [vmem:[%s2 + $0x20] sm:$0xff]
      %v410 = vld [vmem:[%s2 + $0x28] sm:$0xff]
      %v411 = vld [vmem:[%s2 + $0x30] sm:$0xff]
      %v412 = vld [vmem:[%s2 + $0x38] sm:$0xff]
      %414 = vset.pattern.permute.xlu0 0
      %415 = vperm.xlu0 %414, %v405
      %v416 = vpop.permute.xlu0 %415
      %419 = vset.pattern.permute.xlu0 0
      %420 = vperm.xlu0 %419, %v406
      %v421 = vpop.permute.xlu0 %420
      %v424 = vperm.slane %v380, 0
      %v425 = vperm.slane %v380, 4
      %v428 = vperm.slane %v424, 0
      %v429 = vperm.slane %v425, 0
      %v430 = vmul.f32 %v416, %v428
      %v431 = vmul.f32 %v416, %v429
      %v432 = vmul.f32 %v421, %v428
      %v433 = vmul.f32 %v421, %v429
      %434 = vset.pattern.permute.xlu0 1
      %435 = vperm.xlu0 %434, %v405
      %v436 = vpop.permute.xlu0 %435
      %438 = vset.pattern.permute.xlu0 1
      %439 = vperm.xlu0 %438, %v406
      %v440 = vpop.permute.xlu0 %439
      %v442 = vperm.slane %v380, 1
      %v443 = vperm.slane %v380, 5
      %v446 = vperm.slane %v442, 1
      %v447 = vperm.slane %v443, 1
      %v448 = vmul.f32 %v436, %v446
      %v449 = vmul.f32 %v436, %v447
      %v450 = vmul.f32 %v440, %v446
      %v451 = vmul.f32 %v440, %v447
      %v452 = vadd.f32 %v430, %v448
      %v453 = vadd.f32 %v431, %v449
      %v454 = vadd.f32 %v432, %v450
      %v455 = vadd.f32 %v433, %v451
      %456 = vset.pattern.permute.xlu0 2
      %457 = vperm.xlu0 %456, %v405
      %v458 = vpop.permute.xlu0 %457
      %460 = vset.pattern.permute.xlu0 2
      %461 = vperm.xlu0 %460, %v406
      %v462 = vpop.permute.xlu0 %461
      %v464 = vperm.slane %v380, 2
      %v465 = vperm.slane %v380, 6
      %v468 = vperm.slane %v464, 2
      %v469 = vperm.slane %v465, 2
      %v470 = vmul.f32 %v458, %v468
      %v471 = vmul.f32 %v458, %v469
      %v472 = vmul.f32 %v462, %v468
      %v473 = vmul.f32 %v462, %v469
      %v474 = vadd.f32 %v452, %v470
      %v475 = vadd.f32 %v453, %v471
      %v476 = vadd.f32 %v454, %v472
      %v477 = vadd.f32 %v455, %v473
      %478 = vset.pattern.permute.xlu0 3
      %479 = vperm.xlu0 %478, %v405
      %v480 = vpop.permute.xlu0 %479
      %482 = vset.pattern.permute.xlu0 3
      %483 = vperm.xlu0 %482, %v406
      %v484 = vpop.permute.xlu0 %483
      %v486 = vadd.f32 %v474, %v480
      %v487 = vadd.f32 %v475, %v480
      %v488 = vadd.f32 %v476, %v484
      %v489 = vadd.f32 %v477, %v484
      %v490 = vadd.f32 %v486, %v488
      %v491 = vrot.slane %v490, 4
      %v492 = vadd.f32 %v490, %v491
      %v493 = vrot.slane %v492, 2
      %v494 = vadd.f32 %v492, %v493
      %v495 = vrot.slane %v494, 1
      %v496 = vadd.f32 %v494, %v495
      %v497 = vadd.f32 %v487, %v489
      %v498 = vrot.slane %v497, 4
      %v499 = vadd.f32 %v497, %v498
      %v500 = vrot.slane %v499, 2
      %v501 = vadd.f32 %v499, %v500
      %v502 = vrot.slane %v501, 1
      %v503 = vadd.f32 %v501, %v502
      %v504 = vadd.f32 %v389, %v391
      %v505 = vadd.f32 %v504, %v393
      %v506 = vadd.f32 %v505, %v395
      %v507 = vadd.f32 %v506, %v397
      %v508 = vadd.f32 %v507, %v399
      %v509 = vadd.f32 %v508, %v401
      %v510 = vadd.f32 %v509, %v403
      %v511 = vrot.slane %v510, 4
      %v512 = vadd.f32 %v510, %v511
      %v513 = vrot.slane %v512, 2
      %v514 = vadd.f32 %v512, %v513
      %v515 = vrot.slane %v514, 1
      %v516 = vadd.f32 %v514, %v515
      %v517 = vadd.f32 %v390, %v392
      %v518 = vadd.f32 %v517, %v394
      %v519 = vadd.f32 %v518, %v396
      %v520 = vadd.f32 %v519, %v398
      %v521 = vadd.f32 %v520, %v400
      %v522 = vadd.f32 %v521, %v402
      %v523 = vadd.f32 %v522, %v404
      %v524 = vrot.slane %v523, 4
      %v525 = vadd.f32 %v523, %v524
      %v526 = vrot.slane %v525, 2
      %v527 = vadd.f32 %v525, %v526
      %v528 = vrot.slane %v527, 1
      %v529 = vadd.f32 %v527, %v528
      %v530 = vadd.f32 %v496, %v516
      %v531 = vadd.f32 %v503, %v529
      %v532 = vmul.f32 %v530, 0.0125
      %v533 = vmul.f32 %v531, 0.0125
      %v534 = vsub.f32 %v486, %v532
      %v535 = vsub.f32 %v487, %v533
      %v536 = vsub.f32 %v488, %v532
      %v537 = vsub.f32 %v489, %v533
      %v538 = vsub.f32 %v389, %v532
      %v539 = vsub.f32 %v390, %v533
      %v540 = vsub.f32 %v391, %v532
      %v541 = vsub.f32 %v392, %v533
      %v542 = vsub.f32 %v393, %v532
      %v543 = vsub.f32 %v394, %v533
      %v544 = vsub.f32 %v395, %v532
      %v545 = vsub.f32 %v396, %v533
      %v546 = vsub.f32 %v397, %v532
      %v547 = vsub.f32 %v398, %v533
      %v548 = vsub.f32 %v399, %v532
      %v549 = vsub.f32 %v400, %v533
      %v550 = vsub.f32 %v401, %v532
      %v551 = vsub.f32 %v402, %v533
      %v552 = vsub.f32 %v403, %v532
      %v553 = vsub.f32 %v404, %v533
      %v554 = vmul.f32 %v534, %v534
      %v555 = vmul.f32 %v535, %v535
      %v556 = vmul.f32 %v536, %v536
      %v557 = vmul.f32 %v537, %v537
      %v558 = vadd.f32 %v554, %v556
      %v559 = vrot.slane %v558, 4
      %v560 = vadd.f32 %v558, %v559
      %v561 = vrot.slane %v560, 2
      %v562 = vadd.f32 %v560, %v561
      %v563 = vrot.slane %v562, 1
      %v564 = vadd.f32 %v562, %v563
      %v565 = vadd.f32 %v555, %v557
      %v566 = vrot.slane %v565, 4
      %v567 = vadd.f32 %v565, %v566
      %v568 = vrot.slane %v567, 2
      %v569 = vadd.f32 %v567, %v568
      %v570 = vrot.slane %v569, 1
      %v571 = vadd.f32 %v569, %v570
      %v572 = vmul.f32 %v538, %v538
      %v573 = vmul.f32 %v539, %v539
      %v574 = vmul.f32 %v540, %v540
      %v575 = vmul.f32 %v541, %v541
      %v576 = vmul.f32 %v542, %v542
      %v577 = vmul.f32 %v543, %v543
      %v578 = vmul.f32 %v544, %v544
      %v579 = vmul.f32 %v545, %v545
      %v580 = vmul.f32 %v546, %v546
      %v581 = vmul.f32 %v547, %v547
      %v582 = vmul.f32 %v548, %v548
      %v583 = vmul.f32 %v549, %v549
      %v584 = vmul.f32 %v550, %v550
      %v585 = vmul.f32 %v551, %v551
      %v586 = vmul.f32 %v552, %v552
      %v587 = vmul.f32 %v553, %v553
      %v588 = vadd.f32 %v572, %v574
      %v589 = vadd.f32 %v588, %v576
      %v590 = vadd.f32 %v589, %v578
      %v591 = vadd.f32 %v590, %v580
      %v592 = vadd.f32 %v591, %v582
      %v593 = vadd.f32 %v592, %v584
      %v594 = vadd.f32 %v593, %v586
      %v595 = vrot.slane %v594, 4
      %v596 = vadd.f32 %v594, %v595
      %v597 = vrot.slane %v596, 2
      %v598 = vadd.f32 %v596, %v597
      %v599 = vrot.slane %v598, 1
      %v600 = vadd.f32 %v598, %v599
      %v601 = vadd.f32 %v573, %v575
      %v602 = vadd.f32 %v601, %v577
      %v603 = vadd.f32 %v602, %v579
      %v604 = vadd.f32 %v603, %v581
      %v605 = vadd.f32 %v604, %v583
      %v606 = vadd.f32 %v605, %v585
      %v607 = vadd.f32 %v606, %v587
      %v608 = vrot.slane %v607, 4
      %v609 = vadd.f32 %v607, %v608
      %v610 = vrot.slane %v609, 2
      %v611 = vadd.f32 %v609, %v610
      %v612 = vrot.slane %v611, 1
      %v613 = vadd.f32 %v611, %v612
      %v614 = vadd.f32 %v564, %v600
      %v615 = vadd.f32 %v571, %v613
      %v616 = vmul.f32 %v614, 0.0125
      %v617 = vmul.f32 %v615, 0.0125
      %v618 = vadd.f32 %v616, 1e-05
      %v619 = vadd.f32 %v617, 1e-05
      %v620 = vrsqrt.pop %v618
      %v621 = vmul.f32 %v620, %v618
      %v622 = vmul.f32 %v621, %v620
      %v623 = vmul.f32 0.5, %v622
      %v624 = vsub.f32 1.5, %v623
      %v625 = vmul.f32 %v620, %v624
      %vm626 = vweird.f32 %v618
      %vm627 = vweird.f32 %v620
      %vm628 = vmor %vm626, %vm627
      %v629 = vsel %vm628, %v620, %v625
      %v630 = vrsqrt.pop %v619
      %v631 = vmul.f32 %v630, %v619
      %v632 = vmul.f32 %v631, %v630
      %v633 = vmul.f32 0.5, %v632
      %v634 = vsub.f32 1.5, %v633
      %v635 = vmul.f32 %v630, %v634
      %vm636 = vweird.f32 %v619
      %vm637 = vweird.f32 %v630
      %vm638 = vmor %vm636, %vm637
      %v639 = vsel %vm638, %v630, %v635
      %v640 = vmul.f32 %v534, %v629
      %v641 = vmul.f32 %v535, %v639
      %v642 = vmul.f32 %v536, %v629
      %v643 = vmul.f32 %v537, %v639
      %644 = vset.pattern.permute.xlu0 4
      %645 = vperm.xlu0 %644, %v405
      %v646 = vpop.permute.xlu0 %645
      %648 = vset.pattern.permute.xlu0 4
      %649 = vperm.xlu0 %648, %v406
      %v650 = vpop.permute.xlu0 %649
      %v652 = vmul.f32 %v640, %v646
      %v653 = vmul.f32 %v641, %v646
      %v654 = vmul.f32 %v642, %v650
      %v655 = vmul.f32 %v643, %v650
      %656 = vset.pattern.permute.xlu0 5
      %657 = vperm.xlu0 %656, %v405
      %v658 = vpop.permute.xlu0 %657
      %660 = vset.pattern.permute.xlu0 5
      %661 = vperm.xlu0 %660, %v406
      %v662 = vpop.permute.xlu0 %661
      %v664 = vadd.f32 %v652, %v658
      %v665 = vadd.f32 %v653, %v658
      %v666 = vadd.f32 %v654, %v662
      %v667 = vadd.f32 %v655, %v662
      %v668 = vxor.u32 %v664, 2147483648
      %v669 = vxor.u32 %v665, 2147483648
      %v670 = vxor.u32 %v666, 2147483648
      %v671 = vxor.u32 %v667, 2147483648
      %v672 = vmul.f32 %v668, 1.442695
      %v673 = vpow.pop %v672
      %v674 = vmul.f32 %v669, 1.442695
      %v675 = vpow.pop %v674
      %v676 = vmul.f32 %v670, 1.442695
      %v677 = vpow.pop %v676
      %v678 = vmul.f32 %v671, 1.442695
      %v679 = vpow.pop %v678
      %v680 = vadd.f32 %v673, 1.0
      %v681 = vadd.f32 %v675, 1.0
      %v682 = vadd.f32 %v677, 1.0
      %v683 = vadd.f32 %v679, 1.0
      %v684 = vrcp.pop %v680
      %v685 = vmul.f32 %v680, %v684
      %v686 = vsub.f32 1.0, %v685
      %v687 = vmul.f32 %v684, %v686
      %v688 = vadd.f32 %v684, %v687
      %vm689 = vweird.f32 %v680
      %vm690 = vweird.f32 %v684
      %vm691 = vmor %vm689, %vm690
      %v692 = vsel %vm691, %v684, %v688
      %v693 = vand.u32 2147483647, %v680
      %vm694 = vcmp.eq.f32.partialorder %v693, 8.507059e+37
      %v695 = vand.u32 %v680, 2147483648
      %v696 = vor.u32 1.1754944e-38, %v695
      %v697 = vsel %vm694, %v696, %v692
      %v698 = vmul.f32 1.0, %v697
      %v699 = vrcp.pop %v681
      %v700 = vmul.f32 %v681, %v699
      %v701 = vsub.f32 1.0, %v700
      %v702 = vmul.f32 %v699, %v701
      %v703 = vadd.f32 %v699, %v702
      %vm704 = vweird.f32 %v681
      %vm705 = vweird.f32 %v699
      %vm706 = vmor %vm704, %vm705
      %v707 = vsel %vm706, %v699, %v703
      %v708 = vand.u32 2147483647, %v681
      %vm709 = vcmp.eq.f32.partialorder %v708, 8.507059e+37
      %v710 = vand.u32 %v681, 2147483648
      %v711 = vor.u32 1.1754944e-38, %v710
      %v712 = vsel %vm709, %v711, %v707
      %v713 = vmul.f32 1.0, %v712
      %v714 = vrcp.pop %v682
      %v715 = vmul.f32 %v682, %v714
      %v716 = vsub.f32 1.0, %v715
      %v717 = vmul.f32 %v714, %v716
      %v718 = vadd.f32 %v714, %v717
      %vm719 = vweird.f32 %v682
      %vm720 = vweird.f32 %v714
      %vm721 = vmor %vm719, %vm720
      %v722 = vsel %vm721, %v714, %v718
      %v723 = vand.u32 2147483647, %v682
      %vm724 = vcmp.eq.f32.partialorder %v723, 8.507059e+37
      %v725 = vand.u32 %v682, 2147483648
      %v726 = vor.u32 1.1754944e-38, %v725
      %v727 = vsel %vm724, %v726, %v722
      %v728 = vmul.f32 1.0, %v727
      %v729 = vrcp.pop %v683
      %v730 = vmul.f32 %v683, %v729
      %v731 = vsub.f32 1.0, %v730
      %v732 = vmul.f32 %v729, %v731
      %v733 = vadd.f32 %v729, %v732
      %vm734 = vweird.f32 %v683
      %vm735 = vweird.f32 %v729
      %vm736 = vmor %vm734, %vm735
      %v737 = vsel %vm736, %v729, %v733
      %v738 = vand.u32 2147483647, %v683
      %vm739 = vcmp.eq.f32.partialorder %v738, 8.507059e+37
      %v740 = vand.u32 %v683, 2147483648
      %v741 = vor.u32 1.1754944e-38, %v740
      %v742 = vsel %vm739, %v741, %v737
      %v743 = vmul.f32 1.0, %v742
      %v744 = vmul.f32 %v664, %v698
      %v745 = vmul.f32 %v665, %v713
      %v746 = vmul.f32 %v666, %v728
      %v747 = vmul.f32 %v667, %v743
      %v748 = vmul.f32 %v538, %v629
      %v749 = vmul.f32 %v539, %v639
      %v750 = vmul.f32 %v540, %v629
      %v751 = vmul.f32 %v541, %v639
      %v752 = vmul.f32 %v542, %v629
      %v753 = vmul.f32 %v543, %v639
      %v754 = vmul.f32 %v544, %v629
      %v755 = vmul.f32 %v545, %v639
      %v756 = vmul.f32 %v546, %v629
      %v757 = vmul.f32 %v547, %v639
      %v758 = vmul.f32 %v548, %v629
      %v759 = vmul.f32 %v549, %v639
      %v760 = vmul.f32 %v550, %v629
      %v761 = vmul.f32 %v551, %v639
      %v762 = vmul.f32 %v552, %v629
      %v763 = vmul.f32 %v553, %v639
      %764 = vset.pattern.permute.xlu0 6
      %765 = vperm.xlu0 %764, %v405
      %v766 = vpop.permute.xlu0 %765
      %768 = vset.pattern.permute.xlu0 6
      %769 = vperm.xlu0 %768, %v406
      %v770 = vpop.permute.xlu0 %769
      %773 = vset.pattern.permute.xlu0 6
      %774 = vperm.xlu0 %773, %v407
      %v775 = vpop.permute.xlu0 %774
      %778 = vset.pattern.permute.xlu0 6
      %779 = vperm.xlu0 %778, %v408
      %v780 = vpop.permute.xlu0 %779
      %783 = vset.pattern.permute.xlu0 6
      %784 = vperm.xlu0 %783, %v409
      %v785 = vpop.permute.xlu0 %784
      %788 = vset.pattern.permute.xlu0 6
      %789 = vperm.xlu0 %788, %v410
      %v790 = vpop.permute.xlu0 %789
      %793 = vset.pattern.permute.xlu0 6
      %794 = vperm.xlu0 %793, %v411
      %v795 = vpop.permute.xlu0 %794
      %798 = vset.pattern.permute.xlu0 6
      %799 = vperm.xlu0 %798, %v412
      %v800 = vpop.permute.xlu0 %799
      %v802 = vmul.f32 %v748, %v766
      %v803 = vmul.f32 %v749, %v766
      %v804 = vmul.f32 %v750, %v770
      %v805 = vmul.f32 %v751, %v770
      %v806 = vmul.f32 %v752, %v775
      %v807 = vmul.f32 %v753, %v775
      %v808 = vmul.f32 %v754, %v780
      %v809 = vmul.f32 %v755, %v780
      %v810 = vmul.f32 %v756, %v785
      %v811 = vmul.f32 %v757, %v785
      %v812 = vmul.f32 %v758, %v790
      %v813 = vmul.f32 %v759, %v790
      %v814 = vmul.f32 %v760, %v795
      %v815 = vmul.f32 %v761, %v795
      %v816 = vmul.f32 %v762, %v800
      %v817 = vmul.f32 %v763, %v800
      %818 = vset.pattern.permute.xlu0 7
      %819 = vperm.xlu0 %818, %v405
      %v820 = vpop.permute.xlu0 %819
      %822 = vset.pattern.permute.xlu0 7
      %823 = vperm.xlu0 %822, %v406
      %v824 = vpop.permute.xlu0 %823
      %826 = vset.pattern.permute.xlu0 7
      %827 = vperm.xlu0 %826, %v407
      %v828 = vpop.permute.xlu0 %827
      %830 = vset.pattern.permute.xlu0 7
      %831 = vperm.xlu0 %830, %v408
      %v832 = vpop.permute.xlu0 %831
      %834 = vset.pattern.permute.xlu0 7
      %835 = vperm.xlu0 %834, %v409
      %v836 = vpop.permute.xlu0 %835
      %838 = vset.pattern.permute.xlu0 7
      %839 = vperm.xlu0 %838, %v410
      %v840 = vpop.permute.xlu0 %839
      %842 = vset.pattern.permute.xlu0 7
      %843 = vperm.xlu0 %842, %v411
      %v844 = vpop.permute.xlu0 %843
      %846 = vset.pattern.permute.xlu0 7
      %847 = vperm.xlu0 %846, %v412
      %v848 = vpop.permute.xlu0 %847
      %v850 = vadd.f32 %v802, %v820
      %v851 = vadd.f32 %v803, %v820
      %v852 = vadd.f32 %v804, %v824
      %v853 = vadd.f32 %v805, %v824
      %v854 = vadd.f32 %v806, %v828
      %v855 = vadd.f32 %v807, %v828
      %v856 = vadd.f32 %v808, %v832
      %v857 = vadd.f32 %v809, %v832
      %v858 = vadd.f32 %v810, %v836
      %v859 = vadd.f32 %v811, %v836
      %v860 = vadd.f32 %v812, %v840
      %v861 = vadd.f32 %v813, %v840
      %v862 = vadd.f32 %v814, %v844
      %v863 = vadd.f32 %v815, %v844
      %v864 = vadd.f32 %v816, %v848
      %v865 = vadd.f32 %v817, %v848
      %v866 = vxor.u32 %v850, 2147483648
      %v867 = vxor.u32 %v851, 2147483648
      %v868 = vxor.u32 %v852, 2147483648
      %v869 = vxor.u32 %v853, 2147483648
      %v870 = vxor.u32 %v854, 2147483648
      %v871 = vxor.u32 %v855, 2147483648
      %v872 = vxor.u32 %v856, 2147483648
      %v873 = vxor.u32 %v857, 2147483648
      %v874 = vxor.u32 %v858, 2147483648
      %v875 = vxor.u32 %v859, 2147483648
      %v876 = vxor.u32 %v860, 2147483648
      %v877 = vxor.u32 %v861, 2147483648
      %v878 = vxor.u32 %v862, 2147483648
      %v879 = vxor.u32 %v863, 2147483648
      %v880 = vxor.u32 %v864, 2147483648
      %v881 = vxor.u32 %v865, 2147483648
      %v882 = vmul.f32 %v866, 1.442695
      %v883 = vpow.pop %v882
      %v884 = vmul.f32 %v867, 1.442695
      %v885 = vpow.pop %v884
      %v886 = vmul.f32 %v868, 1.442695
      %v887 = vpow.pop %v886
      %v888 = vmul.f32 %v869, 1.442695
      %v889 = vpow.pop %v888
      %v890 = vmul.f32 %v870, 1.442695
      %v891 = vpow.pop %v890
      %v892 = vmul.f32 %v871, 1.442695
      %v893 = vpow.pop %v892
      %v894 = vmul.f32 %v872, 1.442695
      %v895 = vpow.pop %v894
      %v896 = vmul.f32 %v873, 1.442695
      %v897 = vpow.pop %v896
      %v898 = vmul.f32 %v874, 1.442695
      %v899 = vpow.pop %v898
      %v900 = vmul.f32 %v875, 1.442695
      %v901 = vpow.pop %v900
      %v902 = vmul.f32 %v876, 1.442695
      %v903 = vpow.pop %v902
      %v904 = vmul.f32 %v877, 1.442695
      %v905 = vpow.pop %v904
      %v906 = vmul.f32 %v878, 1.442695
      %v907 = vpow.pop %v906
      %v908 = vmul.f32 %v879, 1.442695
      %v909 = vpow.pop %v908
      %v910 = vmul.f32 %v880, 1.442695
      %v911 = vpow.pop %v910
      %v912 = vmul.f32 %v881, 1.442695
      %v913 = vpow.pop %v912
      %v914 = vadd.f32 %v883, 1.0
      %v915 = vadd.f32 %v885, 1.0
      %v916 = vadd.f32 %v887, 1.0
      %v917 = vadd.f32 %v889, 1.0
      %v918 = vadd.f32 %v891, 1.0
      %v919 = vadd.f32 %v893, 1.0
      %v920 = vadd.f32 %v895, 1.0
      %v921 = vadd.f32 %v897, 1.0
      %v922 = vadd.f32 %v899, 1.0
      %v923 = vadd.f32 %v901, 1.0
      %v924 = vadd.f32 %v903, 1.0
      %v925 = vadd.f32 %v905, 1.0
      %v926 = vadd.f32 %v907, 1.0
      %v927 = vadd.f32 %v909, 1.0
      %v928 = vadd.f32 %v911, 1.0
      %v929 = vadd.f32 %v913, 1.0
      %v930 = vrcp.pop %v914
      %v931 = vmul.f32 %v914, %v930
      %v932 = vsub.f32 1.0, %v931
      %v933 = vmul.f32 %v930, %v932
      %v934 = vadd.f32 %v930, %v933
      %vm935 = vweird.f32 %v914
      %vm936 = vweird.f32 %v930
      %vm937 = vmor %vm935, %vm936
      %v938 = vsel %vm937, %v930, %v934
      %v939 = vand.u32 2147483647, %v914
      %vm940 = vcmp.eq.f32.partialorder %v939, 8.507059e+37
      %v941 = vand.u32 %v914, 2147483648
      %v942 = vor.u32 1.1754944e-38, %v941
      %v943 = vsel %vm940, %v942, %v938
      %v944 = vmul.f32 1.0, %v943
      %v945 = vrcp.pop %v915
      %v946 = vmul.f32 %v915, %v945
      %v947 = vsub.f32 1.0, %v946
      %v948 = vmul.f32 %v945, %v947
      %v949 = vadd.f32 %v945, %v948
      %vm950 = vweird.f32 %v915
      %vm951 = vweird.f32 %v945
      %vm952 = vmor %vm950, %vm951
      %v953 = vsel %vm952, %v945, %v949
      %v954 = vand.u32 2147483647, %v915
      %vm955 = vcmp.eq.f32.partialorder %v954, 8.507059e+37
      %v956 = vand.u32 %v915, 2147483648
      %v957 = vor.u32 1.1754944e-38, %v956
      %v958 = vsel %vm955, %v957, %v953
      %v959 = vmul.f32 1.0, %v958
      %v960 = vrcp.pop %v916
      %v961 = vmul.f32 %v916, %v960
      %v962 = vsub.f32 1.0, %v961
      %v963 = vmul.f32 %v960, %v962
      %v964 = vadd.f32 %v960, %v963
      %vm965 = vweird.f32 %v916
      %vm966 = vweird.f32 %v960
      %vm967 = vmor %vm965, %vm966
      %v968 = vsel %vm967, %v960, %v964
      %v969 = vand.u32 2147483647, %v916
      %vm970 = vcmp.eq.f32.partialorder %v969, 8.507059e+37
      %v971 = vand.u32 %v916, 2147483648
      %v972 = vor.u32 1.1754944e-38, %v971
      %v973 = vsel %vm970, %v972, %v968
      %v974 = vmul.f32 1.0, %v973
      %v975 = vrcp.pop %v917
      %v976 = vmul.f32 %v917, %v975
      %v977 = vsub.f32 1.0, %v976
      %v978 = vmul.f32 %v975, %v977
      %v979 = vadd.f32 %v975, %v978
      %vm980 = vweird.f32 %v917
      %vm981 = vweird.f32 %v975
      %vm982 = vmor %vm980, %vm981
      %v983 = vsel %vm982, %v975, %v979
      %v984 = vand.u32 2147483647, %v917
      %vm985 = vcmp.eq.f32.partialorder %v984, 8.507059e+37
      %v986 = vand.u32 %v917, 2147483648
      %v987 = vor.u32 1.1754944e-38, %v986
      %v988 = vsel %vm985, %v987, %v983
      %v989 = vmul.f32 1.0, %v988
      %v990 = vrcp.pop %v918
      %v991 = vmul.f32 %v918, %v990
      %v992 = vsub.f32 1.0, %v991
      %v993 = vmul.f32 %v990, %v992
      %v994 = vadd.f32 %v990, %v993
      %vm995 = vweird.f32 %v918
      %vm996 = vweird.f32 %v990
      %vm997 = vmor %vm995, %vm996
      %v998 = vsel %vm997, %v990, %v994
      %v999 = vand.u32 2147483647, %v918
      %vm1000 = vcmp.eq.f32.partialorder %v999, 8.507059e+37
      %v1001 = vand.u32 %v918, 2147483648
      %v1002 = vor.u32 1.1754944e-38, %v1001
      %v1003 = vsel %vm1000, %v1002, %v998
      %v1004 = vmul.f32 1.0, %v1003
      %v1005 = vrcp.pop %v919
      %v1006 = vmul.f32 %v919, %v1005
      %v1007 = vsub.f32 1.0, %v1006
      %v1008 = vmul.f32 %v1005, %v1007
      %v1009 = vadd.f32 %v1005, %v1008
      %vm1010 = vweird.f32 %v919
      %vm1011 = vweird.f32 %v1005
      %vm1012 = vmor %vm1010, %vm1011
      %v1013 = vsel %vm1012, %v1005, %v1009
      %v1014 = vand.u32 2147483647, %v919
      %vm1015 = vcmp.eq.f32.partialorder %v1014, 8.507059e+37
      %v1016 = vand.u32 %v919, 2147483648
      %v1017 = vor.u32 1.1754944e-38, %v1016
      %v1018 = vsel %vm1015, %v1017, %v1013
      %v1019 = vmul.f32 1.0, %v1018
      %v1020 = vrcp.pop %v920
      %v1021 = vmul.f32 %v920, %v1020
      %v1022 = vsub.f32 1.0, %v1021
      %v1023 = vmul.f32 %v1020, %v1022
      %v1024 = vadd.f32 %v1020, %v1023
      %vm1025 = vweird.f32 %v920
      %vm1026 = vweird.f32 %v1020
      %vm1027 = vmor %vm1025, %vm1026
      %v1028 = vsel %vm1027, %v1020, %v1024
      %v1029 = vand.u32 2147483647, %v920
      %vm1030 = vcmp.eq.f32.partialorder %v1029, 8.507059e+37
      %v1031 = vand.u32 %v920, 2147483648
      %v1032 = vor.u32 1.1754944e-38, %v1031
      %v1033 = vsel %vm1030, %v1032, %v1028
      %v1034 = vmul.f32 1.0, %v1033
      %v1035 = vrcp.pop %v921
      %v1036 = vmul.f32 %v921, %v1035
      %v1037 = vsub.f32 1.0, %v1036
      %v1038 = vmul.f32 %v1035, %v1037
      %v1039 = vadd.f32 %v1035, %v1038
      %vm1040 = vweird.f32 %v921
      %vm1041 = vweird.f32 %v1035
      %vm1042 = vmor %vm1040, %vm1041
      %v1043 = vsel %vm1042, %v1035, %v1039
      %v1044 = vand.u32 2147483647, %v921
      %vm1045 = vcmp.eq.f32.partialorder %v1044, 8.507059e+37
      %v1046 = vand.u32 %v921, 2147483648
      %v1047 = vor.u32 1.1754944e-38, %v1046
      %v1048 = vsel %vm1045, %v1047, %v1043
      %v1049 = vmul.f32 1.0, %v1048
      %v1050 = vrcp.pop %v922
      %v1051 = vmul.f32 %v922, %v1050
      %v1052 = vsub.f32 1.0, %v1051
      %v1053 = vmul.f32 %v1050, %v1052
      %v1054 = vadd.f32 %v1050, %v1053
      %vm1055 = vweird.f32 %v922
      %vm1056 = vweird.f32 %v1050
      %vm1057 = vmor %vm1055, %vm1056
      %v1058 = vsel %vm1057, %v1050, %v1054
      %v1059 = vand.u32 2147483647, %v922
      %vm1060 = vcmp.eq.f32.partialorder %v1059, 8.507059e+37
      %v1061 = vand.u32 %v922, 2147483648
      %v1062 = vor.u32 1.1754944e-38, %v1061
      %v1063 = vsel %vm1060, %v1062, %v1058
      %v1064 = vmul.f32 1.0, %v1063
      %v1065 = vrcp.pop %v923
      %v1066 = vmul.f32 %v923, %v1065
      %v1067 = vsub.f32 1.0, %v1066
      %v1068 = vmul.f32 %v1065, %v1067
      %v1069 = vadd.f32 %v1065, %v1068
      %vm1070 = vweird.f32 %v923
      %vm1071 = vweird.f32 %v1065
      %vm1072 = vmor %vm1070, %vm1071
      %v1073 = vsel %vm1072, %v1065, %v1069
      %v1074 = vand.u32 2147483647, %v923
      %vm1075 = vcmp.eq.f32.partialorder %v1074, 8.507059e+37
      %v1076 = vand.u32 %v923, 2147483648
      %v1077 = vor.u32 1.1754944e-38, %v1076
      %v1078 = vsel %vm1075, %v1077, %v1073
      %v1079 = vmul.f32 1.0, %v1078
      %v1080 = vrcp.pop %v924
      %v1081 = vmul.f32 %v924, %v1080
      %v1082 = vsub.f32 1.0, %v1081
      %v1083 = vmul.f32 %v1080, %v1082
      %v1084 = vadd.f32 %v1080, %v1083
      %vm1085 = vweird.f32 %v924
      %vm1086 = vweird.f32 %v1080
      %vm1087 = vmor %vm1085, %vm1086
      %v1088 = vsel %vm1087, %v1080, %v1084
      %v1089 = vand.u32 2147483647, %v924
      %vm1090 = vcmp.eq.f32.partialorder %v1089, 8.507059e+37
      %v1091 = vand.u32 %v924, 2147483648
      %v1092 = vor.u32 1.1754944e-38, %v1091
      %v1093 = vsel %vm1090, %v1092, %v1088
      %v1094 = vmul.f32 1.0, %v1093
      %v1095 = vrcp.pop %v925
      %v1096 = vmul.f32 %v925, %v1095
      %v1097 = vsub.f32 1.0, %v1096
      %v1098 = vmul.f32 %v1095, %v1097
      %v1099 = vadd.f32 %v1095, %v1098
      %vm1100 = vweird.f32 %v925
      %vm1101 = vweird.f32 %v1095
      %vm1102 = vmor %vm1100, %vm1101
      %v1103 = vsel %vm1102, %v1095, %v1099
      %v1104 = vand.u32 2147483647, %v925
      %vm1105 = vcmp.eq.f32.partialorder %v1104, 8.507059e+37
      %v1106 = vand.u32 %v925, 2147483648
      %v1107 = vor.u32 1.1754944e-38, %v1106
      %v1108 = vsel %vm1105, %v1107, %v1103
      %v1109 = vmul.f32 1.0, %v1108
      %v1110 = vrcp.pop %v926
      %v1111 = vmul.f32 %v926, %v1110
      %v1112 = vsub.f32 1.0, %v1111
      %v1113 = vmul.f32 %v1110, %v1112
      %v1114 = vadd.f32 %v1110, %v1113
      %vm1115 = vweird.f32 %v926
      %vm1116 = vweird.f32 %v1110
      %vm1117 = vmor %vm1115, %vm1116
      %v1118 = vsel %vm1117, %v1110, %v1114
      %v1119 = vand.u32 2147483647, %v926
      %vm1120 = vcmp.eq.f32.partialorder %v1119, 8.507059e+37
      %v1121 = vand.u32 %v926, 2147483648
      %v1122 = vor.u32 1.1754944e-38, %v1121
      %v1123 = vsel %vm1120, %v1122, %v1118
      %v1124 = vmul.f32 1.0, %v1123
      %v1125 = vrcp.pop %v927
      %v1126 = vmul.f32 %v927, %v1125
      %v1127 = vsub.f32 1.0, %v1126
      %v1128 = vmul.f32 %v1125, %v1127
      %v1129 = vadd.f32 %v1125, %v1128
      %vm1130 = vweird.f32 %v927
      %vm1131 = vweird.f32 %v1125
      %vm1132 = vmor %vm1130, %vm1131
      %v1133 = vsel %vm1132, %v1125, %v1129
      %v1134 = vand.u32 2147483647, %v927
      %vm1135 = vcmp.eq.f32.partialorder %v1134, 8.507059e+37
      %v1136 = vand.u32 %v927, 2147483648
      %v1137 = vor.u32 1.1754944e-38, %v1136
      %v1138 = vsel %vm1135, %v1137, %v1133
      %v1139 = vmul.f32 1.0, %v1138
      %v1140 = vrcp.pop %v928
      %v1141 = vmul.f32 %v928, %v1140
      %v1142 = vsub.f32 1.0, %v1141
      %v1143 = vmul.f32 %v1140, %v1142
      %v1144 = vadd.f32 %v1140, %v1143
      %vm1145 = vweird.f32 %v928
      %vm1146 = vweird.f32 %v1140
      %vm1147 = vmor %vm1145, %vm1146
      %v1148 = vsel %vm1147, %v1140, %v1144
      %v1149 = vand.u32 2147483647, %v928
      %vm1150 = vcmp.eq.f32.partialorder %v1149, 8.507059e+37
      %v1151 = vand.u32 %v928, 2147483648
      %v1152 = vor.u32 1.1754944e-38, %v1151
      %v1153 = vsel %vm1150, %v1152, %v1148
      %v1154 = vmul.f32 1.0, %v1153
      %v1155 = vrcp.pop %v929
      %v1156 = vmul.f32 %v929, %v1155
      %v1157 = vsub.f32 1.0, %v1156
      %v1158 = vmul.f32 %v1155, %v1157
      %v1159 = vadd.f32 %v1155, %v1158
      %vm1160 = vweird.f32 %v929
      %vm1161 = vweird.f32 %v1155
      %vm1162 = vmor %vm1160, %vm1161
      %v1163 = vsel %vm1162, %v1155, %v1159
      %v1164 = vand.u32 2147483647, %v929
      %vm1165 = vcmp.eq.f32.partialorder %v1164, 8.507059e+37
      %v1166 = vand.u32 %v929, 2147483648
      %v1167 = vor.u32 1.1754944e-38, %v1166
      %v1168 = vsel %vm1165, %v1167, %v1163
      %v1169 = vmul.f32 1.0, %v1168
      %v1170 = vmul.f32 %v850, %v944
      %v1171 = vmul.f32 %v851, %v959
      %v1172 = vmul.f32 %v852, %v974
      %v1173 = vmul.f32 %v853, %v989
      %v1174 = vmul.f32 %v854, %v1004
      %v1175 = vmul.f32 %v855, %v1019
      %v1176 = vmul.f32 %v856, %v1034
      %v1177 = vmul.f32 %v857, %v1049
      %v1178 = vmul.f32 %v858, %v1064
      %v1179 = vmul.f32 %v859, %v1079
      %v1180 = vmul.f32 %v860, %v1094
      %v1181 = vmul.f32 %v861, %v1109
      %v1182 = vmul.f32 %v862, %v1124
      %v1183 = vmul.f32 %v863, %v1139
      %v1184 = vmul.f32 %v864, %v1154
      %v1185 = vmul.f32 %v865, %v1169
      %v1186 = vld [vmem:[%s3] sm:$0xf]
      %v1187 = vld [vmem:[%s3 + $0x4] sm:$0xf]
      %v1188 = vld [vmem:[%s3 + $0x8] sm:$0xf]
      %v1189 = vld [vmem:[%s3 + $0xc] sm:$0xf]
      %v1190 = vpack.c.bf16 %v746, %v744
      %v1191 = vpack.c.bf16 %v747, %v745
      %v1192 = vld [vmem:[%s4] sm:$0xf]
      %v1193 = vld [vmem:[%s4 + $0x4] sm:$0xf]
      %v1194 = vld [vmem:[%s4 + $0x8] sm:$0xf]
      %v1195 = vld [vmem:[%s4 + $0xc] sm:$0xf]
      %v1196 = vpack.c.bf16 %v1172, %v1170
      %v1197 = vpack.c.bf16 %v1173, %v1171
      %v1198 = vpack.c.bf16 %v1176, %v1174
      %v1199 = vpack.c.bf16 %v1177, %v1175
      %v1200 = vpack.c.bf16 %v1180, %v1178
      %v1201 = vpack.c.bf16 %v1181, %v1179
      %v1202 = vpack.c.bf16 %v1184, %v1182
      %v1203 = vpack.c.bf16 %v1185, %v1183
      %v1208 = vunpack.c.l.b16 %v1192
      %v1209 = vunpack.c.l.b16 %v1193
      %v1210 = vunpack.c.l.b16 %v1194
      %v1211 = vunpack.c.l.b16 %v1195
      %v1212 = vpack.c.b16 %v1209, %v1208
      %v1213 = vpack.c.b16 %v1211, %v1210
      %vm1214 = vcmask 523264
      %v1216 = vsel %vm1214, %v1212, 0
      %v1219 = vsel %vm1214, %v1213, 0
      %1221 = vmatpush.bf16.msra.mxu0 0
      %1222 = vmatpush.bf16.msra.mxu0 0
      %1223 = vmatpush.bf16.msra.mxu0 0
      %1224 = vmatpush.bf16.msra.mxu0 0
      %1225 = vmatpush.bf16.msra.mxu0 %v1202
      %1226 = vmatpush.bf16.msra.mxu0 %v1200
      %1227 = vmatpush.bf16.msra.mxu0 %v1198
      %1228 = vmatpush.bf16.msra.mxu0 %v1196
      %1229 = vmatmul.bf16.gmra.mxu0 %v1216
      %v1230 = vpop.f32.mrf.mxu0
      %v1231 = vadd.f32 0.0, %v1230
      %v1232 = vpop.f32.mrf.mxu0
      %v1233 = vadd.f32 0.0, %v1232
      %1234 = vmatmul.bf16.gmra.mxu0 %v1219
      %v1235 = vpop.f32.mrf.mxu0
      %v1236 = vadd.f32 0.0, %v1235
      %v1237 = vpop.f32.mrf.mxu0
      %v1238 = vadd.f32 0.0, %v1237
      %1239 = vdwg.mxu0
      %1240 = vmatpush.bf16.msra.mxu0 0
      %1241 = vmatpush.bf16.msra.mxu0 0
      %1242 = vmatpush.bf16.msra.mxu0 0
      %1243 = vmatpush.bf16.msra.mxu0 0
      %1244 = vmatpush.bf16.msra.mxu0 %v1203
      %1245 = vmatpush.bf16.msra.mxu0 %v1201
      %1246 = vmatpush.bf16.msra.mxu0 %v1199
      %1247 = vmatpush.bf16.msra.mxu0 %v1197
      %1248 = vmatmul.bf16.gmra.mxu0 %v1216
      %v1249 = vpop.f32.mrf.mxu0
      %v1250 = vadd.f32 0.0, %v1249
      %v1251 = vpop.f32.mrf.mxu0
      %v1252 = vadd.f32 0.0, %v1251
      %1253 = vmatmul.bf16.gmra.mxu0 %v1219
      %v1254 = vpop.f32.mrf.mxu0
      %v1255 = vadd.f32 0.0, %v1254
      %v1256 = vpop.f32.mrf.mxu0
      %v1257 = vadd.f32 0.0, %v1256
      %1258 = vdwg.mxu0
      %v1263 = vunpack.c.l.b16 %v1186
      %v1264 = vunpack.c.l.b16 %v1187
      %v1265 = vunpack.c.l.b16 %v1188
      %v1266 = vunpack.c.l.b16 %v1189
      %v1267 = vpack.c.b16 %v1264, %v1263
      %v1268 = vpack.c.b16 %v1266, %v1265
      %vm1269 = vcmask 130048
      %v1271 = vsel %vm1269, %v1267, 0
      %v1274 = vsel %vm1269, %v1268, 0
      %1276 = vmatpush.bf16.msra.mxu0 0
      %1277 = vmatpush.bf16.msra.mxu0 0
      %1278 = vmatpush.bf16.msra.mxu0 0
      %1279 = vmatpush.bf16.msra.mxu0 0
      %1280 = vmatpush.bf16.msra.mxu0 0
      %1281 = vmatpush.bf16.msra.mxu0 0
      %1282 = vmatpush.bf16.msra.mxu0 0
      %1283 = vmatpush.bf16.msra.mxu0 %v1190
      %1284 = vmatmul.bf16.gmra.mxu0 %v1271
      %v1285 = vpop.f32.mrf.mxu0
      %v1286 = vadd.f32 %v1231, %v1285
      %v1287 = vpop.f32.mrf.mxu0
      %v1288 = vadd.f32 %v1233, %v1287
      %1289 = vmatmul.bf16.gmra.mxu0 %v1274
      %v1290 = vpop.f32.mrf.mxu0
      %v1291 = vadd.f32 %v1236, %v1290
      %v1292 = vpop.f32.mrf.mxu0
      %v1293 = vadd.f32 %v1238, %v1292
      %1294 = vdwg.mxu0
      %1295 = vmatpush.bf16.msra.mxu0 0
      %1296 = vmatpush.bf16.msra.mxu0 0
      %1297 = vmatpush.bf16.msra.mxu0 0
      %1298 = vmatpush.bf16.msra.mxu0 0
      %1299 = vmatpush.bf16.msra.mxu0 0
      %1300 = vmatpush.bf16.msra.mxu0 0
      %1301 = vmatpush.bf16.msra.mxu0 0
      %1302 = vmatpush.bf16.msra.mxu0 %v1191
      %1303 = vmatmul.bf16.gmra.mxu0 %v1271
      %v1304 = vpop.f32.mrf.mxu0
      %v1305 = vadd.f32 %v1250, %v1304
      %v1306 = vpop.f32.mrf.mxu0
      %v1307 = vadd.f32 %v1252, %v1306
      %1308 = vmatmul.bf16.gmra.mxu0 %v1274
      %v1309 = vpop.f32.mrf.mxu0
      %v1310 = vadd.f32 %v1255, %v1309
      %v1311 = vpop.f32.mrf.mxu0
      %v1312 = vadd.f32 %v1257, %v1311
      %1313 = vdwg.mxu0
      %1314 = vset.pattern.permute.xlu0 8
      %1315 = vperm.xlu0 %1314, %v405
      %v1316 = vpop.permute.xlu0 %1315
      %1318 = vset.pattern.permute.xlu0 8
      %1319 = vperm.xlu0 %1318, %v406
      %v1320 = vpop.permute.xlu0 %1319
      %1322 = vset.pattern.permute.xlu0 8
      %1323 = vperm.xlu0 %1322, %v407
      %v1324 = vpop.permute.xlu0 %1323
      %1326 = vset.pattern.permute.xlu0 8
      %1327 = vperm.xlu0 %1326, %v408
      %v1328 = vpop.permute.xlu0 %1327
      %v1330 = vadd.f32 %v1286, %v1316
      %v1331 = vadd.f32 %v1305, %v1316
      %v1332 = vadd.f32 %v1288, %v1320
      %v1333 = vadd.f32 %v1307, %v1320
      %v1334 = vadd.f32 %v1291, %v1324
      %v1335 = vadd.f32 %v1310, %v1324
      %v1336 = vadd.f32 %v1293, %v1328
      %v1337 = vadd.f32 %v1312, %v1328
      %v1338 = vadd.f32 %v1330, %v1332
      %v1339 = vadd.f32 %v1338, %v1334
      %v1340 = vadd.f32 %v1339, %v1336
      %v1341 = vrot.slane %v1340, 4
      %v1342 = vadd.f32 %v1340, %v1341
      %v1343 = vrot.slane %v1342, 2
      %v1344 = vadd.f32 %v1342, %v1343
      %v1345 = vrot.slane %v1344, 1
      %v1346 = vadd.f32 %v1344, %v1345
      %v1347 = vadd.f32 %v1331, %v1333
      %v1348 = vadd.f32 %v1347, %v1335
      %v1349 = vadd.f32 %v1348, %v1337
      %v1350 = vrot.slane %v1349, 4
      %v1351 = vadd.f32 %v1349, %v1350
      %v1352 = vrot.slane %v1351, 2
      %v1353 = vadd.f32 %v1351, %v1352
      %v1354 = vrot.slane %v1353, 1
      %v1355 = vadd.f32 %v1353, %v1354
      %v1356 = vrcp.pop 32.0
      %v1357 = vmul.f32 32.0, %v1356
      %v1358 = vsub.f32 1.0, %v1357
      %v1359 = vmul.f32 %v1356, %v1358
      %v1360 = vadd.f32 %v1356, %v1359
      %vm1361 = vweird.f32 %v1356
      %v1362 = vsel %vm1361, %v1356, %v1360
      %v1363 = vmul.f32 %v1346, %v1362
      %v1364 = vmul.f32 %v1355, %v1362
      %v1365 = vsub.f32 %v1330, %v1363
      %v1366 = vsub.f32 %v1331, %v1364
      %v1367 = vsub.f32 %v1332, %v1363
      %v1368 = vsub.f32 %v1333, %v1364
      %v1369 = vsub.f32 %v1334, %v1363
      %v1370 = vsub.f32 %v1335, %v1364
      %v1371 = vsub.f32 %v1336, %v1363
      %v1372 = vsub.f32 %v1337, %v1364
      %v1373 = vmul.f32 %v1365, %v1365
      %v1374 = vmul.f32 %v1366, %v1366
      %v1375 = vmul.f32 %v1367, %v1367
      %v1376 = vmul.f32 %v1368, %v1368
      %v1377 = vmul.f32 %v1369, %v1369
      %v1378 = vmul.f32 %v1370, %v1370
      %v1379 = vmul.f32 %v1371, %v1371
      %v1380 = vmul.f32 %v1372, %v1372
      %v1381 = vadd.f32 %v1373, %v1375
      %v1382 = vadd.f32 %v1381, %v1377
      %v1383 = vadd.f32 %v1382, %v1379
      %v1384 = vrot.slane %v1383, 4
      %v1385 = vadd.f32 %v1383, %v1384
      %v1386 = vrot.slane %v1385, 2
      %v1387 = vadd.f32 %v1385, %v1386
      %v1388 = vrot.slane %v1387, 1
      %v1389 = vadd.f32 %v1387, %v1388
      %v1390 = vadd.f32 %v1374, %v1376
      %v1391 = vadd.f32 %v1390, %v1378
      %v1392 = vadd.f32 %v1391, %v1380
      %v1393 = vrot.slane %v1392, 4
      %v1394 = vadd.f32 %v1392, %v1393
      %v1395 = vrot.slane %v1394, 2
      %v1396 = vadd.f32 %v1394, %v1395
      %v1397 = vrot.slane %v1396, 1
      %v1398 = vadd.f32 %v1396, %v1397
      %v1399 = vmul.f32 %v1389, %v1362
      %v1400 = vmul.f32 %v1398, %v1362
      %v1401 = vadd.f32 %v1399, 1e-05
      %v1402 = vadd.f32 %v1400, 1e-05
      %v1403 = vrsqrt.pop %v1401
      %v1404 = vmul.f32 %v1403, %v1401
      %v1405 = vmul.f32 %v1404, %v1403
      %v1406 = vmul.f32 0.5, %v1405
      %v1407 = vsub.f32 1.5, %v1406
      %v1408 = vmul.f32 %v1403, %v1407
      %vm1409 = vweird.f32 %v1401
      %vm1410 = vweird.f32 %v1403
      %vm1411 = vmor %vm1409, %vm1410
      %v1412 = vsel %vm1411, %v1403, %v1408
      %v1413 = vrsqrt.pop %v1402
      %v1414 = vmul.f32 %v1413, %v1402
      %v1415 = vmul.f32 %v1414, %v1413
      %v1416 = vmul.f32 0.5, %v1415
      %v1417 = vsub.f32 1.5, %v1416
      %v1418 = vmul.f32 %v1413, %v1417
      %vm1419 = vweird.f32 %v1402
      %vm1420 = vweird.f32 %v1413
      %vm1421 = vmor %vm1419, %vm1420
      %v1422 = vsel %vm1421, %v1413, %v1418
      %v1423 = vmul.f32 %v1365, %v1412
      %v1424 = vmul.f32 %v1366, %v1422
      %v1425 = vmul.f32 %v1367, %v1412
      %v1426 = vmul.f32 %v1368, %v1422
      %v1427 = vmul.f32 %v1369, %v1412
      %v1428 = vmul.f32 %v1370, %v1422
      %v1429 = vmul.f32 %v1371, %v1412
      %v1430 = vmul.f32 %v1372, %v1422
      %1431 = vset.pattern.permute.xlu0 9
      %1432 = vperm.xlu0 %1431, %v405
      %v1433 = vpop.permute.xlu0 %1432
      %1435 = vset.pattern.permute.xlu0 9
      %1436 = vperm.xlu0 %1435, %v406
      %v1437 = vpop.permute.xlu0 %1436
      %1439 = vset.pattern.permute.xlu0 9
      %1440 = vperm.xlu0 %1439, %v407
      %v1441 = vpop.permute.xlu0 %1440
      %1443 = vset.pattern.permute.xlu0 9
      %1444 = vperm.xlu0 %1443, %v408
      %v1445 = vpop.permute.xlu0 %1444
      %v1447 = vmul.f32 %v1423, %v1433
      %v1448 = vmul.f32 %v1424, %v1433
      %v1449 = vmul.f32 %v1425, %v1437
      %v1450 = vmul.f32 %v1426, %v1437
      %v1451 = vmul.f32 %v1427, %v1441
      %v1452 = vmul.f32 %v1428, %v1441
      %v1453 = vmul.f32 %v1429, %v1445
      %v1454 = vmul.f32 %v1430, %v1445
      %1455 = vset.pattern.permute.xlu0 10
      %1456 = vperm.xlu0 %1455, %v405
      %v1457 = vpop.permute.xlu0 %1456
      %1459 = vset.pattern.permute.xlu0 10
      %1460 = vperm.xlu0 %1459, %v406
      %v1461 = vpop.permute.xlu0 %1460
      %1463 = vset.pattern.permute.xlu0 10
      %1464 = vperm.xlu0 %1463, %v407
      %v1465 = vpop.permute.xlu0 %1464
      %1467 = vset.pattern.permute.xlu0 10
      %1468 = vperm.xlu0 %1467, %v408
      %v1469 = vpop.permute.xlu0 %1468
      %v1471 = vadd.f32 %v1447, %v1457
      %v1472 = vadd.f32 %v1448, %v1457
      %v1473 = vadd.f32 %v1449, %v1461
      %v1474 = vadd.f32 %v1450, %v1461
      %v1475 = vadd.f32 %v1451, %v1465
      %v1476 = vadd.f32 %v1452, %v1465
      %v1477 = vadd.f32 %v1453, %v1469
      %v1478 = vadd.f32 %v1454, %v1469
      %v1479 = vxor.u32 %v1471, 2147483648
      %v1480 = vxor.u32 %v1472, 2147483648
      %v1481 = vxor.u32 %v1473, 2147483648
      %v1482 = vxor.u32 %v1474, 2147483648
      %v1483 = vxor.u32 %v1475, 2147483648
      %v1484 = vxor.u32 %v1476, 2147483648
      %v1485 = vxor.u32 %v1477, 2147483648
      %v1486 = vxor.u32 %v1478, 2147483648
      %v1487 = vmul.f32 %v1479, 1.442695
      %v1488 = vpow.pop %v1487
      %v1489 = vmul.f32 %v1480, 1.442695
      %v1490 = vpow.pop %v1489
      %v1491 = vmul.f32 %v1481, 1.442695
      %v1492 = vpow.pop %v1491
      %v1493 = vmul.f32 %v1482, 1.442695
      %v1494 = vpow.pop %v1493
      %v1495 = vmul.f32 %v1483, 1.442695
      %v1496 = vpow.pop %v1495
      %v1497 = vmul.f32 %v1484, 1.442695
      %v1498 = vpow.pop %v1497
      %v1499 = vmul.f32 %v1485, 1.442695
      %v1500 = vpow.pop %v1499
      %v1501 = vmul.f32 %v1486, 1.442695
      %v1502 = vpow.pop %v1501
      %v1503 = vadd.f32 %v1488, 1.0
      %v1504 = vadd.f32 %v1490, 1.0
      %v1505 = vadd.f32 %v1492, 1.0
      %v1506 = vadd.f32 %v1494, 1.0
      %v1507 = vadd.f32 %v1496, 1.0
      %v1508 = vadd.f32 %v1498, 1.0
      %v1509 = vadd.f32 %v1500, 1.0
      %v1510 = vadd.f32 %v1502, 1.0
      %v1511 = vrcp.pop %v1503
      %v1512 = vmul.f32 %v1503, %v1511
      %v1513 = vsub.f32 1.0, %v1512
      %v1514 = vmul.f32 %v1511, %v1513
      %v1515 = vadd.f32 %v1511, %v1514
      %vm1516 = vweird.f32 %v1503
      %vm1517 = vweird.f32 %v1511
      %vm1518 = vmor %vm1516, %vm1517
      %v1519 = vsel %vm1518, %v1511, %v1515
      %v1520 = vand.u32 2147483647, %v1503
      %vm1521 = vcmp.eq.f32.partialorder %v1520, 8.507059e+37
      %v1522 = vand.u32 %v1503, 2147483648
      %v1523 = vor.u32 1.1754944e-38, %v1522
      %v1524 = vsel %vm1521, %v1523, %v1519
      %v1525 = vmul.f32 1.0, %v1524
      %v1526 = vrcp.pop %v1504
      %v1527 = vmul.f32 %v1504, %v1526
      %v1528 = vsub.f32 1.0, %v1527
      %v1529 = vmul.f32 %v1526, %v1528
      %v1530 = vadd.f32 %v1526, %v1529
      %vm1531 = vweird.f32 %v1504
      %vm1532 = vweird.f32 %v1526
      %vm1533 = vmor %vm1531, %vm1532
      %v1534 = vsel %vm1533, %v1526, %v1530
      %v1535 = vand.u32 2147483647, %v1504
      %vm1536 = vcmp.eq.f32.partialorder %v1535, 8.507059e+37
      %v1537 = vand.u32 %v1504, 2147483648
      %v1538 = vor.u32 1.1754944e-38, %v1537
      %v1539 = vsel %vm1536, %v1538, %v1534
      %v1540 = vmul.f32 1.0, %v1539
      %v1541 = vrcp.pop %v1505
      %v1542 = vmul.f32 %v1505, %v1541
      %v1543 = vsub.f32 1.0, %v1542
      %v1544 = vmul.f32 %v1541, %v1543
      %v1545 = vadd.f32 %v1541, %v1544
      %vm1546 = vweird.f32 %v1505
      %vm1547 = vweird.f32 %v1541
      %vm1548 = vmor %vm1546, %vm1547
      %v1549 = vsel %vm1548, %v1541, %v1545
      %v1550 = vand.u32 2147483647, %v1505
      %vm1551 = vcmp.eq.f32.partialorder %v1550, 8.507059e+37
      %v1552 = vand.u32 %v1505, 2147483648
      %v1553 = vor.u32 1.1754944e-38, %v1552
      %v1554 = vsel %vm1551, %v1553, %v1549
      %v1555 = vmul.f32 1.0, %v1554
      %v1556 = vrcp.pop %v1506
      %v1557 = vmul.f32 %v1506, %v1556
      %v1558 = vsub.f32 1.0, %v1557
      %v1559 = vmul.f32 %v1556, %v1558
      %v1560 = vadd.f32 %v1556, %v1559
      %vm1561 = vweird.f32 %v1506
      %vm1562 = vweird.f32 %v1556
      %vm1563 = vmor %vm1561, %vm1562
      %v1564 = vsel %vm1563, %v1556, %v1560
      %v1565 = vand.u32 2147483647, %v1506
      %vm1566 = vcmp.eq.f32.partialorder %v1565, 8.507059e+37
      %v1567 = vand.u32 %v1506, 2147483648
      %v1568 = vor.u32 1.1754944e-38, %v1567
      %v1569 = vsel %vm1566, %v1568, %v1564
      %v1570 = vmul.f32 1.0, %v1569
      %v1571 = vrcp.pop %v1507
      %v1572 = vmul.f32 %v1507, %v1571
      %v1573 = vsub.f32 1.0, %v1572
      %v1574 = vmul.f32 %v1571, %v1573
      %v1575 = vadd.f32 %v1571, %v1574
      %vm1576 = vweird.f32 %v1507
      %vm1577 = vweird.f32 %v1571
      %vm1578 = vmor %vm1576, %vm1577
      %v1579 = vsel %vm1578, %v1571, %v1575
      %v1580 = vand.u32 2147483647, %v1507
      %vm1581 = vcmp.eq.f32.partialorder %v1580, 8.507059e+37
      %v1582 = vand.u32 %v1507, 2147483648
      %v1583 = vor.u32 1.1754944e-38, %v1582
      %v1584 = vsel %vm1581, %v1583, %v1579
      %v1585 = vmul.f32 1.0, %v1584
      %v1586 = vrcp.pop %v1508
      %v1587 = vmul.f32 %v1508, %v1586
      %v1588 = vsub.f32 1.0, %v1587
      %v1589 = vmul.f32 %v1586, %v1588
      %v1590 = vadd.f32 %v1586, %v1589
      %vm1591 = vweird.f32 %v1508
      %vm1592 = vweird.f32 %v1586
      %vm1593 = vmor %vm1591, %vm1592
      %v1594 = vsel %vm1593, %v1586, %v1590
      %v1595 = vand.u32 2147483647, %v1508
      %vm1596 = vcmp.eq.f32.partialorder %v1595, 8.507059e+37
      %v1597 = vand.u32 %v1508, 2147483648
      %v1598 = vor.u32 1.1754944e-38, %v1597
      %v1599 = vsel %vm1596, %v1598, %v1594
      %v1600 = vmul.f32 1.0, %v1599
      %v1601 = vrcp.pop %v1509
      %v1602 = vmul.f32 %v1509, %v1601
      %v1603 = vsub.f32 1.0, %v1602
      %v1604 = vmul.f32 %v1601, %v1603
      %v1605 = vadd.f32 %v1601, %v1604
      %vm1606 = vweird.f32 %v1509
      %vm1607 = vweird.f32 %v1601
      %vm1608 = vmor %vm1606, %vm1607
      %v1609 = vsel %vm1608, %v1601, %v1605
      %v1610 = vand.u32 2147483647, %v1509
      %vm1611 = vcmp.eq.f32.partialorder %v1610, 8.507059e+37
      %v1612 = vand.u32 %v1509, 2147483648
      %v1613 = vor.u32 1.1754944e-38, %v1612
      %v1614 = vsel %vm1611, %v1613, %v1609
      %v1615 = vmul.f32 1.0, %v1614
      %v1616 = vrcp.pop %v1510
      %v1617 = vmul.f32 %v1510, %v1616
      %v1618 = vsub.f32 1.0, %v1617
      %v1619 = vmul.f32 %v1616, %v1618
      %v1620 = vadd.f32 %v1616, %v1619
      %vm1621 = vweird.f32 %v1510
      %vm1622 = vweird.f32 %v1616
      %vm1623 = vmor %vm1621, %vm1622
      %v1624 = vsel %vm1623, %v1616, %v1620
      %v1625 = vand.u32 2147483647, %v1510
      %vm1626 = vcmp.eq.f32.partialorder %v1625, 8.507059e+37
      %v1627 = vand.u32 %v1510, 2147483648
      %v1628 = vor.u32 1.1754944e-38, %v1627
      %v1629 = vsel %vm1626, %v1628, %v1624
      %v1630 = vmul.f32 1.0, %v1629
      %v1631 = vmul.f32 %v1471, %v1525
      %v1632 = vmul.f32 %v1472, %v1540
      %v1633 = vmul.f32 %v1473, %v1555
      %v1634 = vmul.f32 %v1474, %v1570
      %v1635 = vmul.f32 %v1475, %v1585
      %v1636 = vmul.f32 %v1476, %v1600
      %v1637 = vmul.f32 %v1477, %v1615
      %v1638 = vmul.f32 %v1478, %v1630
      %v1639 = vld [vmem:[%s5] sm:$0xf]
      %v1640 = vld [vmem:[%s5 + $0x4] sm:$0xf]
      %v1641 = vpack.c.bf16 %v1633, %v1631
      %v1642 = vpack.c.bf16 %v1634, %v1632
      %v1643 = vpack.c.bf16 %v1637, %v1635
      %v1644 = vpack.c.bf16 %v1638, %v1636
      %1645 = vset.pattern.permute.xlu0 11
      %1646 = vperm.xlu0 %1645, %v405
      %v1647 = vpop.permute.xlu0 %1646
      %1649 = vset.pattern.permute.xlu0 11
      %1650 = vperm.xlu0 %1649, %v406
      %v1651 = vpop.permute.xlu0 %1650
      %v1655 = vunpack.c.l.b16 %v1639
      %v1656 = vunpack.c.l.b16 %v1640
      %v1657 = vpack.c.b16 %v1656, %v1655
      %vm1658 = vcmask 261120
      %v1660 = vsel %vm1658, %v1657, 0
      %1662 = vmatpush.bf16.msra.mxu0 0
      %1663 = vmatpush.bf16.msra.mxu0 0
      %1664 = vmatpush.bf16.msra.mxu0 0
      %1665 = vmatpush.bf16.msra.mxu0 0
      %1666 = vmatpush.bf16.msra.mxu0 0
      %1667 = vmatpush.bf16.msra.mxu0 0
      %1668 = vmatpush.bf16.msra.mxu0 %v1643
      %1669 = vmatpush.bf16.msra.mxu0 %v1641
      %1670 = vmatmul.bf16.gmra.mxu0 %v1660
      %v1671 = vpop.f32.mrf.mxu0
      %v1672 = vadd.f32 %v1647, %v1671
      %v1673 = vpop.f32.mrf.mxu0
      %v1674 = vadd.f32 %v1651, %v1673
      %1675 = vdwg.mxu0
      %1676 = vmatpush.bf16.msra.mxu0 0
      %1677 = vmatpush.bf16.msra.mxu0 0
      %1678 = vmatpush.bf16.msra.mxu0 0
      %1679 = vmatpush.bf16.msra.mxu0 0
      %1680 = vmatpush.bf16.msra.mxu0 0
      %1681 = vmatpush.bf16.msra.mxu0 0
      %1682 = vmatpush.bf16.msra.mxu0 %v1644
      %1683 = vmatpush.bf16.msra.mxu0 %v1642
      %1684 = vmatmul.bf16.gmra.mxu0 %v1660
      %v1685 = vpop.f32.mrf.mxu0
      %v1686 = vadd.f32 %v1647, %v1685
      %v1687 = vpop.f32.mrf.mxu0
      %v1688 = vadd.f32 %v1651, %v1687
      %1689 = vdwg.mxu0
      %v1690 = vld [vmem:[%s6] sm:$0xf]
      %v1691 = vld [vmem:[%s6 + $0x4] sm:$0xf]
      %v1692 = vpack.c.bf16 %v488, %v486
      %v1693 = vpack.c.bf16 %v489, %v487
      %v1694 = vld [vmem:[%s7] sm:$0xf]
      %v1695 = vld [vmem:[%s7 + $0x4] sm:$0xf]
      %v1698 = vunpack.c.l.b16 %v1694
      %v1699 = vunpack.c.l.b16 %v1695
      %v1700 = vpack.c.b16 %v1699, %v1698
      %v1709 = vunpack.c.l.b16 %v381
      %v1710 = vunpack.c.h.b16 %v381
      %v1711 = vunpack.c.l.b16 %v382
      %v1712 = vunpack.c.h.b16 %v382
      %v1713 = vunpack.c.l.b16 %v383
      %v1714 = vunpack.c.h.b16 %v383
      %v1715 = vunpack.c.l.b16 %v384
      %v1716 = vunpack.c.h.b16 %v384
      %v1717 = vunpack.c.l.b16 %v385
      %v1718 = vunpack.c.h.b16 %v385
      %v1719 = vunpack.c.l.b16 %v386
      %v1720 = vunpack.c.h.b16 %v386
      %v1721 = vunpack.c.l.b16 %v387
      %v1722 = vunpack.c.h.b16 %v387
      %v1723 = vunpack.c.l.b16 %v388
      %v1724 = vunpack.c.h.b16 %v388
      %v1725 = vpack.c.b16 %v1711, %v1709
      %v1726 = vpack.c.b16 %v1712, %v1710
      %v1727 = vpack.c.b16 %v1715, %v1713
      %v1728 = vpack.c.b16 %v1716, %v1714
      %v1729 = vpack.c.b16 %v1719, %v1717
      %v1730 = vpack.c.b16 %v1720, %v1718
      %v1731 = vpack.c.b16 %v1723, %v1721
      %v1732 = vpack.c.b16 %v1724, %v1722
      %v1742 = vsel %vm1214, %v1700, 0
      %1744 = vmatpush.bf16.msra.mxu0 0
      %1745 = vmatpush.bf16.msra.mxu0 0
      %1746 = vmatpush.bf16.msra.mxu0 0
      %1747 = vmatpush.bf16.msra.mxu0 0
      %1748 = vmatpush.bf16.msra.mxu0 %v1731
      %1749 = vmatpush.bf16.msra.mxu0 %v1729
      %1750 = vmatpush.bf16.msra.mxu0 %v1727
      %1751 = vmatpush.bf16.msra.mxu0 %v1725
      %1752 = vmatmul.bf16.gmra.mxu0 %v1742
      %v1753 = vpop.f32.mrf.mxu0
      %v1754 = vadd.f32 0.0, %v1753
      %v1755 = vpop.f32.mrf.mxu0
      %v1756 = vadd.f32 0.0, %v1755
      %1757 = vdwg.mxu0
      %1758 = vmatpush.bf16.msra.mxu0 0
      %1759 = vmatpush.bf16.msra.mxu0 0
      %1760 = vmatpush.bf16.msra.mxu0 0
      %1761 = vmatpush.bf16.msra.mxu0 0
      %1762 = vmatpush.bf16.msra.mxu0 %v1732
      %1763 = vmatpush.bf16.msra.mxu0 %v1730
      %1764 = vmatpush.bf16.msra.mxu0 %v1728
      %1765 = vmatpush.bf16.msra.mxu0 %v1726
      %1766 = vmatmul.bf16.gmra.mxu0 %v1742
      %v1767 = vpop.f32.mrf.mxu0
      %v1768 = vadd.f32 0.0, %v1767
      %v1769 = vpop.f32.mrf.mxu0
      %v1770 = vadd.f32 0.0, %v1769
      %1771 = vdwg.mxu0
      %v1774 = vunpack.c.l.b16 %v1690
      %v1775 = vunpack.c.l.b16 %v1691
      %v1776 = vpack.c.b16 %v1775, %v1774
      %v1778 = vsel %vm1269, %v1776, 0
      %1780 = vmatpush.bf16.msra.mxu0 0
      %1781 = vmatpush.bf16.msra.mxu0 0
      %1782 = vmatpush.bf16.msra.mxu0 0
      %1783 = vmatpush.bf16.msra.mxu0 0
      %1784 = vmatpush.bf16.msra.mxu0 0
      %1785 = vmatpush.bf16.msra.mxu0 0
      %1786 = vmatpush.bf16.msra.mxu0 0
      %1787 = vmatpush.bf16.msra.mxu0 %v1692
      %1788 = vmatmul.bf16.gmra.mxu0 %v1778
      %v1789 = vpop.f32.mrf.mxu0
      %v1790 = vadd.f32 %v1754, %v1789
      %v1791 = vpop.f32.mrf.mxu0
      %v1792 = vadd.f32 %v1756, %v1791
      %1793 = vdwg.mxu0
      %1794 = vmatpush.bf16.msra.mxu0 0
      %1795 = vmatpush.bf16.msra.mxu0 0
      %1796 = vmatpush.bf16.msra.mxu0 0
      %1797 = vmatpush.bf16.msra.mxu0 0
      %1798 = vmatpush.bf16.msra.mxu0 0
      %1799 = vmatpush.bf16.msra.mxu0 0
      %1800 = vmatpush.bf16.msra.mxu0 0
      %1801 = vmatpush.bf16.msra.mxu0 %v1693
      %1802 = vmatmul.bf16.gmra.mxu0 %v1778
      %v1803 = vpop.f32.mrf.mxu0
      %v1804 = vadd.f32 %v1768, %v1803
      %v1805 = vpop.f32.mrf.mxu0
      %v1806 = vadd.f32 %v1770, %v1805
      %1807 = vdwg.mxu0
      %1808 = vset.pattern.permute.xlu0 12
      %1809 = vperm.xlu0 %1808, %v405
      %v1810 = vpop.permute.xlu0 %1809
      %1812 = vset.pattern.permute.xlu0 12
      %1813 = vperm.xlu0 %1812, %v406
      %v1814 = vpop.permute.xlu0 %1813
      %v1816 = vadd.f32 %v1790, %v1810
      %v1817 = vadd.f32 %v1804, %v1810
      %v1818 = vadd.f32 %v1792, %v1814
      %v1819 = vadd.f32 %v1806, %v1814
      %v1820 = vadd.f32 %v1672, %v1816
      %v1821 = vadd.f32 %v1686, %v1817
      %v1822 = vadd.f32 %v1674, %v1818
      %v1823 = vadd.f32 %v1688, %v1819
      %v1824 = vadd.f32 %v1820, %v1822
      %v1825 = vrot.slane %v1824, 4
      %v1826 = vadd.f32 %v1824, %v1825
      %v1827 = vrot.slane %v1826, 2
      %v1828 = vadd.f32 %v1826, %v1827
      %v1829 = vrot.slane %v1828, 1
      %v1830 = vadd.f32 %v1828, %v1829
      %v1831 = vadd.f32 %v1821, %v1823
      %v1832 = vrot.slane %v1831, 4
      %v1833 = vadd.f32 %v1831, %v1832
      %v1834 = vrot.slane %v1833, 2
      %v1835 = vadd.f32 %v1833, %v1834
      %v1836 = vrot.slane %v1835, 1
      %v1837 = vadd.f32 %v1835, %v1836
      %v1838 = vrcp.pop 16.0
      %v1839 = vmul.f32 16.0, %v1838
      %v1840 = vsub.f32 1.0, %v1839
      %v1841 = vmul.f32 %v1838, %v1840
      %v1842 = vadd.f32 %v1838, %v1841
      %vm1843 = vweird.f32 %v1838
      %v1844 = vsel %vm1843, %v1838, %v1842
      %v1845 = vmul.f32 %v1830, %v1844
      %v1846 = vmul.f32 %v1837, %v1844
      %v1847 = vsub.f32 %v1820, %v1845
      %v1848 = vsub.f32 %v1821, %v1846
      %v1849 = vsub.f32 %v1822, %v1845
      %v1850 = vsub.f32 %v1823, %v1846
      %v1851 = vmul.f32 %v1847, %v1847
      %v1852 = vmul.f32 %v1848, %v1848
      %v1853 = vmul.f32 %v1849, %v1849
      %v1854 = vmul.f32 %v1850, %v1850
      %v1855 = vadd.f32 %v1851, %v1853
      %v1856 = vrot.slane %v1855, 4
      %v1857 = vadd.f32 %v1855, %v1856
      %v1858 = vrot.slane %v1857, 2
      %v1859 = vadd.f32 %v1857, %v1858
      %v1860 = vrot.slane %v1859, 1
      %v1861 = vadd.f32 %v1859, %v1860
      %v1862 = vadd.f32 %v1852, %v1854
      %v1863 = vrot.slane %v1862, 4
      %v1864 = vadd.f32 %v1862, %v1863
      %v1865 = vrot.slane %v1864, 2
      %v1866 = vadd.f32 %v1864, %v1865
      %v1867 = vrot.slane %v1866, 1
      %v1868 = vadd.f32 %v1866, %v1867
      %v1869 = vmul.f32 %v1861, %v1844
      %v1870 = vmul.f32 %v1868, %v1844
      %v1871 = vadd.f32 %v1869, 1e-05
      %v1872 = vadd.f32 %v1870, 1e-05
      %v1873 = vrsqrt.pop %v1871
      %v1874 = vmul.f32 %v1873, %v1871
      %v1875 = vmul.f32 %v1874, %v1873
      %v1876 = vmul.f32 0.5, %v1875
      %v1877 = vsub.f32 1.5, %v1876
      %v1878 = vmul.f32 %v1873, %v1877
      %vm1879 = vweird.f32 %v1871
      %vm1880 = vweird.f32 %v1873
      %vm1881 = vmor %vm1879, %vm1880
      %v1882 = vsel %vm1881, %v1873, %v1878
      %v1883 = vrsqrt.pop %v1872
      %v1884 = vmul.f32 %v1883, %v1872
      %v1885 = vmul.f32 %v1884, %v1883
      %v1886 = vmul.f32 0.5, %v1885
      %v1887 = vsub.f32 1.5, %v1886
      %v1888 = vmul.f32 %v1883, %v1887
      %vm1889 = vweird.f32 %v1872
      %vm1890 = vweird.f32 %v1883
      %vm1891 = vmor %vm1889, %vm1890
      %v1892 = vsel %vm1891, %v1883, %v1888
      %v1893 = vmul.f32 %v1847, %v1882
      %v1894 = vmul.f32 %v1848, %v1892
      %v1895 = vmul.f32 %v1849, %v1882
      %v1896 = vmul.f32 %v1850, %v1892
      %1897 = vset.pattern.permute.xlu0 13
      %1898 = vperm.xlu0 %1897, %v405
      %v1899 = vpop.permute.xlu0 %1898
      %1901 = vset.pattern.permute.xlu0 13
      %1902 = vperm.xlu0 %1901, %v406
      %v1903 = vpop.permute.xlu0 %1902
      %v1905 = vmul.f32 %v1893, %v1899
      %v1906 = vmul.f32 %v1894, %v1899
      %v1907 = vmul.f32 %v1895, %v1903
      %v1908 = vmul.f32 %v1896, %v1903
      %1909 = vset.pattern.permute.xlu0 14
      %1910 = vperm.xlu0 %1909, %v405
      %v1911 = vpop.permute.xlu0 %1910
      %1913 = vset.pattern.permute.xlu0 14
      %1914 = vperm.xlu0 %1913, %v406
      %v1915 = vpop.permute.xlu0 %1914
      %v1917 = vadd.f32 %v1905, %v1911
      %v1918 = vadd.f32 %v1906, %v1911
      %v1919 = vadd.f32 %v1907, %v1915
      %v1920 = vadd.f32 %v1908, %v1915
      %v1921 = vxor.u32 %v1917, 2147483648
      %v1922 = vxor.u32 %v1918, 2147483648
      %v1923 = vxor.u32 %v1919, 2147483648
      %v1924 = vxor.u32 %v1920, 2147483648
      %v1925 = vmul.f32 %v1921, 1.442695
      %v1926 = vpow.pop %v1925
      %v1927 = vmul.f32 %v1922, 1.442695
      %v1928 = vpow.pop %v1927
      %v1929 = vmul.f32 %v1923, 1.442695
      %v1930 = vpow.pop %v1929
      %v1931 = vmul.f32 %v1924, 1.442695
      %v1932 = vpow.pop %v1931
      %v1933 = vadd.f32 %v1926, 1.0
      %v1934 = vadd.f32 %v1928, 1.0
      %v1935 = vadd.f32 %v1930, 1.0
      %v1936 = vadd.f32 %v1932, 1.0
      %v1937 = vrcp.pop %v1933
      %v1938 = vmul.f32 %v1933, %v1937
      %v1939 = vsub.f32 1.0, %v1938
      %v1940 = vmul.f32 %v1937, %v1939
      %v1941 = vadd.f32 %v1937, %v1940
      %vm1942 = vweird.f32 %v1933
      %vm1943 = vweird.f32 %v1937
      %vm1944 = vmor %vm1942, %vm1943
      %v1945 = vsel %vm1944, %v1937, %v1941
      %v1946 = vand.u32 2147483647, %v1933
      %vm1947 = vcmp.eq.f32.partialorder %v1946, 8.507059e+37
      %v1948 = vand.u32 %v1933, 2147483648
      %v1949 = vor.u32 1.1754944e-38, %v1948
      %v1950 = vsel %vm1947, %v1949, %v1945
      %v1951 = vmul.f32 1.0, %v1950
      %v1952 = vrcp.pop %v1934
      %v1953 = vmul.f32 %v1934, %v1952
      %v1954 = vsub.f32 1.0, %v1953
      %v1955 = vmul.f32 %v1952, %v1954
      %v1956 = vadd.f32 %v1952, %v1955
      %vm1957 = vweird.f32 %v1934
      %vm1958 = vweird.f32 %v1952
      %vm1959 = vmor %vm1957, %vm1958
      %v1960 = vsel %vm1959, %v1952, %v1956
      %v1961 = vand.u32 2147483647, %v1934
      %vm1962 = vcmp.eq.f32.partialorder %v1961, 8.507059e+37
      %v1963 = vand.u32 %v1934, 2147483648
      %v1964 = vor.u32 1.1754944e-38, %v1963
      %v1965 = vsel %vm1962, %v1964, %v1960
      %v1966 = vmul.f32 1.0, %v1965
      %v1967 = vrcp.pop %v1935
      %v1968 = vmul.f32 %v1935, %v1967
      %v1969 = vsub.f32 1.0, %v1968
      %v1970 = vmul.f32 %v1967, %v1969
      %v1971 = vadd.f32 %v1967, %v1970
      %vm1972 = vweird.f32 %v1935
      %vm1973 = vweird.f32 %v1967
      %vm1974 = vmor %vm1972, %vm1973
      %v1975 = vsel %vm1974, %v1967, %v1971
      %v1976 = vand.u32 2147483647, %v1935
      %vm1977 = vcmp.eq.f32.partialorder %v1976, 8.507059e+37
      %v1978 = vand.u32 %v1935, 2147483648
      %v1979 = vor.u32 1.1754944e-38, %v1978
      %v1980 = vsel %vm1977, %v1979, %v1975
      %v1981 = vmul.f32 1.0, %v1980
      %v1982 = vrcp.pop %v1936
      %v1983 = vmul.f32 %v1936, %v1982
      %v1984 = vsub.f32 1.0, %v1983
      %v1985 = vmul.f32 %v1982, %v1984
      %v1986 = vadd.f32 %v1982, %v1985
      %vm1987 = vweird.f32 %v1936
      %vm1988 = vweird.f32 %v1982
      %vm1989 = vmor %vm1987, %vm1988
      %v1990 = vsel %vm1989, %v1982, %v1986
      %v1991 = vand.u32 2147483647, %v1936
      %vm1992 = vcmp.eq.f32.partialorder %v1991, 8.507059e+37
      %v1993 = vand.u32 %v1936, 2147483648
      %v1994 = vor.u32 1.1754944e-38, %v1993
      %v1995 = vsel %vm1992, %v1994, %v1990
      %v1996 = vmul.f32 1.0, %v1995
      %v1997 = vmul.f32 %v1917, %v1951
      %v1998 = vmul.f32 %v1918, %v1966
      %v1999 = vmul.f32 %v1919, %v1981
      %v2000 = vmul.f32 %v1920, %v1996
      %2001 = vset.pattern.permute.xlu0 15
      %2002 = vperm.xlu0 %2001, %v405
      %v2003 = vpop.permute.xlu0 %2002
      %2005 = vset.pattern.permute.xlu0 15
      %2006 = vperm.xlu0 %2005, %v406
      %v2007 = vpop.permute.xlu0 %2006
      %v2009 = vmul.f32 %v1997, %v2003
      %v2010 = vmul.f32 %v1998, %v2003
      %v2011 = vmul.f32 %v1999, %v2007
      %v2012 = vmul.f32 %v2000, %v2007
      %v2013 = vadd.f32 %v2009, %v2011
      %v2014 = vrot.slane %v2013, 4
      %v2015 = vadd.f32 %v2013, %v2014
      %v2016 = vrot.slane %v2015, 2
      %v2017 = vadd.f32 %v2015, %v2016
      %v2018 = vrot.slane %v2017, 1
      %v2019 = vadd.f32 %v2017, %v2018
      %v2020 = vadd.f32 %v2010, %v2012
      %v2021 = vrot.slane %v2020, 4
      %v2022 = vadd.f32 %v2020, %v2021
      %v2023 = vrot.slane %v2022, 2
      %v2024 = vadd.f32 %v2022, %v2023
      %v2025 = vrot.slane %v2024, 1
      %v2026 = vadd.f32 %v2024, %v2025
      %2027 = vset.pattern.permute.xlu0 16
      %2028 = vperm.xlu0 %2027, %v405
      %v2029 = vpop.permute.xlu0 %2028
      %v2031 = vadd.f32 %v2019, %v2029
      %v2032 = vadd.f32 %v2026, %v2029
      %v2035 = vrot.slane %v2032, 7
      %vm2036 = vcmask 1040384
      %v2037 = vsel %vm2036, %v2031, %v2035
      %v2039 = vlaneseq
      %vm2040 = vcmp.ge.s32.totalorder %v2039, 0
      %vm2041 = vcmp.lt.s32.totalorder %v2039, 256
      %vm2042 = vmand %vm2040, %vm2041
      %2043 = vst.msk [vmem:[%s377] sm:$0x3] %vm2042, %v2037
      %s2044 = smul.u32 2, %s24
      %p2045 = scmp.lt.s32.totalorder %s23, 1
      %s2046 = scalar_select %p2045, %s23, 1
      %p2047 = scmp.lt.s32.totalorder %s2044, 1
      %s2048 = scalar_select %p2047, %s2044, 1
      %s2049 = smul.addr %s2046, 2
      %s2050 = sadd.s32 %s2048, %s2049
      %s2051 = scalar_lea.vmem %s8, %s2050
      // Predicated region
      $region53: #{suction_quality_forward.1} parent=51 // pred_check
        %p2052 = pneg %p233
      $region54: #{suction_quality_forward.1} parent=51 // pred_check_branch
        %2054 = sbr.rel (%p2052) target = $region56
      $region55: #{suction_quality_forward.1} parent=51 // pred_region
        %s2055 = smul.u32 2, %s24
      $region56: #{suction_quality_forward.1} parent=51 // pred_fallthru
        _
    $region52: #{suction_quality_forward.1} parent=5 // pred_fallthru
      _
    %p2056 = scmp.le.s32.totalorder 2, %s14
    // Predicated region
    $region57: #{suction_quality_forward.1} parent=5 // pred_check
      %p2057 = pneg %p2056
    $region58: #{suction_quality_forward.1} parent=5 // pred_check_branch
      %2059 = sbr.rel (%p2057) target = $region60
    $region59: #{suction_quality_forward.1} parent=5 // pred_region
      %s2060 = ssub.s32 %s14, 2
      // Predicated region
      $region61: #{suction_quality_forward.1} parent=59 // pred_check
        %p2061 = pneg %p239
      $region62: #{suction_quality_forward.1} parent=59 // pred_check_branch
        %2063 = sbr.rel (%p2061) target = $region64
      $region63: #{suction_quality_forward.1} parent=59 // pred_region
        %s2064 = smul.u32 2, %s26
        %p2065 = scmp.lt.s32.totalorder %s25, 1
        %s2066 = scalar_select %p2065, %s25, 1
        %p2067 = scmp.lt.s32.totalorder %s2064, 1
        %s2068 = scalar_select %p2067, %s2064, 1
        %s2069 = smul.addr %s2066, 2
        %s2070 = sadd.s32 %s2068, %s2069
        %s2071 = scalar_lea.vmem %s8, %s2070
      $region64: #{suction_quality_forward.1} parent=59 // pred_fallthru
        _
    $region60: #{suction_quality_forward.1} parent=5 // pred_fallthru
      _
  $region6: #{suction_quality_forward.1} parent=0 // loop_footer
    %s18 = sadd.s32 1, %s14
  $region7: #{suction_quality_forward.1} parent=0 // loop_footer_branch
    %13 = sbr.rel target = $region3
  $region8: #{suction_quality_forward.1} parent=0 // loop_exit
    _

</llo_original>
